<compile_context>
chip_gen: v7x
topology: tpu7x:2x2x1
jax: 0.10.0
libtpu: 0.0.40
codegen_flags: <defaults>
</compile_context>

<pallas_src>
import math
from functools import lru_cache

import jax
import jax.numpy as jnp
from jax.experimental import pallas as pl
from jax.experimental.pallas import tpu as pltpu


def _round_up(a, b):
    return -(-a // b) * b


@lru_cache(maxsize=1)
def _vmem_capacity_bytes():
    try:
        return int(pltpu.get_tpu_info().vmem_capacity_bytes)
    except Exception:
        return 64 << 20           # conservative (v7x-sized) fallback


def _vmem_cap_with_headroom():
    # Never request all of physical VMEM: leave ~16 MiB for Mosaic internal
    # scratch, semaphores, and double-buffer copies (48 MiB on v7x, 112 on v5e/v6e).
    return max(16 << 20, _vmem_capacity_bytes() - (16 << 20))


def _compiler_params(dimension_semantics, block_bytes):
    need = 2 * int(block_bytes) + (4 << 20)   # double-buffered blocks + headroom
    vmem = int(min(max(need, 16 << 20), _vmem_cap_with_headroom()))
    return pltpu.CompilerParams(dimension_semantics=dimension_semantics,
                                vmem_limit_bytes=vmem)


# ----------------------------------------------------------------------------
# Kernel 1: tiled GCNConv  K = (A_hat @ X) @ Wk + bk,  V = (A_hat @ X) @ Wv + bv
# (K projection already carries the 1/sqrt(dim_V) attention scale.)
# ----------------------------------------------------------------------------
def gcn_kernel(a_ref, x_ref, wk_ref, bk_ref, wv_ref, bv_ref, k_ref, v_ref, acc_ref):
    @pl.when(pl.program_id(1) == 0)
    def _():
        acc_ref[...] = jnp.zeros_like(acc_ref)

    # A_hat[i-block, k-block] @ X[k-block]   (bf16 MXU, f32 accumulation)
    acc_ref[...] += jnp.dot(a_ref[...], x_ref[...],
                            preferred_element_type=jnp.float32)

    # epilogue: project aggregated node features with Wk / Wv (+ bias)
    @pl.when(pl.program_id(1) == pl.num_programs(1) - 1)
    def _():
        ax = acc_ref[...].astype(jnp.bfloat16)
        k_ref[...] = (jnp.dot(ax, wk_ref[...], preferred_element_type=jnp.float32)
                      + bk_ref[...]).astype(k_ref.dtype)
        v_ref[...] = (jnp.dot(ax, wv_ref[...], preferred_element_type=jnp.float32)
                      + bv_ref[...]).astype(v_ref.dtype)


def gcn_kv(a_pad, x_pad, wk, bk, wv, bv, *, tm, tk):
    n_rows, n_cols = a_pad.shape
    dk = x_pad.shape[1]
    dv_pad = wk.shape[1]
    dk_l = max(dk, 128)    # lane-padded footprint of the narrow feature dim
    block_bytes = (tm * tk * 2 + tk * dk_l * 2
                   + 2 * (dk_l * dv_pad * 2 + dv_pad * 4)
                   + 2 * tm * dv_pad * 2
                   + tm * dk_l * 4)
    return pl.pallas_call(
        gcn_kernel,
        out_shape=(jax.ShapeDtypeStruct((n_rows, dv_pad), jnp.bfloat16),
                   jax.ShapeDtypeStruct((n_rows, dv_pad), jnp.bfloat16)),
        grid=(n_rows // tm, n_cols // tk),
        in_specs=[
            pl.BlockSpec((tm, tk), lambda i, k: (i, k)),
            pl.BlockSpec((tk, dk), lambda i, k: (k, 0)),
            pl.BlockSpec((dk, dv_pad), lambda i, k: (0, 0)),
            pl.BlockSpec((1, dv_pad), lambda i, k: (0, 0)),
            pl.BlockSpec((dk, dv_pad), lambda i, k: (0, 0)),
            pl.BlockSpec((1, dv_pad), lambda i, k: (0, 0)),
        ],
        out_specs=(pl.BlockSpec((tm, dv_pad), lambda i, k: (i, 0)),
                   pl.BlockSpec((tm, dv_pad), lambda i, k: (i, 0))),
        scratch_shapes=[pltpu.VMEM((tm, dk), jnp.float32)],
        compiler_params=_compiler_params(("parallel", "arbitrary"), block_bytes),
    )(a_pad, x_pad, wk, bk, wv, bv)


# ----------------------------------------------------------------------------
# Kernel 2 (fused): fc_q + masked MHA + residual + LN0 + fc_o + ReLU + LN1
# Grid over batch blocks of Bblk graphs; all matmuls are 2D MXU calls.
# ----------------------------------------------------------------------------
def make_fused_attention_kernel(num_heads, dh, dh_pad, dim_V, block_b):
    inv_dv = 1.0 / dim_V
    eps = 1e-5
    use_fmask = (dh != dh_pad)     # per-head pad lanes exist -> mask LN deviations

    def kernel(q_ref, wq_ref, bq_ref, k_ref, v_ref, bias_ref,
               g0_ref, be0_ref, wo_ref, bo_ref, g1_ref, be1_ref, fmask_ref,
               out_ref):
        wq = wq_ref[...]
        bq = bq_ref[...]
        wo = wo_ref[...]
        bo = bo_ref[...]
        g0, be0 = g0_ref[...], be0_ref[...]
        g1, be1 = g1_ref[...], be1_ref[...]
        fmask = fmask_ref[...] if use_fmask else None

        def layer_norm(t, g, b):
            mu = jnp.sum(t, axis=-1, keepdims=True) * inv_dv
            d = t - mu
            if use_fmask:
                d = d * fmask                       # zero the pad lanes before var
            var = jnp.sum(d * d, axis=-1, keepdims=True) * inv_dv
            return d * jax.lax.rsqrt(var + eps) * g + b

        for b in range(block_b):                    # static unroll over graphs in block
            # fc_q for all heads in ONE lane-dense (>=128-wide output) matmul
            qh = jnp.dot(q_ref[b].astype(jnp.bfloat16), wq,
                         preferred_element_type=jnp.float32) + bq     # (nq, dv_pad)
            qh_bf = qh.astype(jnp.bfloat16)
            kb = k_ref[b]            # (nk, dv_pad) bf16, already scaled by 1/sqrt(dim_V)
            vb = v_ref[b]            # (nk, dv_pad) bf16
            bias = bias_ref[b]       # (1, nk) additive mask bias (precomputed in wrapper)

            o_pieces = []
            for h in range(num_heads):              # static 32-lane stripes per head
                lo = h * dh_pad
                q_h = qh_bf[:, lo:lo + dh_pad]
                k_h = kb[:, lo:lo + dh_pad]
                v_h = vb[:, lo:lo + dh_pad]
                # scores: contract last dims (no explicit K^T materialization)
                s = jax.lax.dot_general(q_h, k_h, (((1,), (1,)), ((), ())),
                                        preferred_element_type=jnp.float32) + bias
                s = s - jnp.max(s, axis=-1, keepdims=True)
                p = jnp.exp(s)
                a = p * pl.reciprocal(jnp.sum(p, axis=-1, keepdims=True), approx=True)
                o_pieces.append(jnp.dot(a.astype(jnp.bfloat16), v_h,
                                        preferred_element_type=jnp.float32))

            # head merge (static lane concat) + residual, then LN0/fc_o/ReLU/LN1 fused
            x = qh + jnp.concatenate(o_pieces, axis=-1)               # (nq, dv_pad)
            x = layer_norm(x, g0, be0)
            x = x + jnp.maximum(
                jnp.dot(x.astype(jnp.bfloat16), wo,
                        preferred_element_type=jnp.float32) + bo, 0.0)
            x = layer_norm(x, g1, be1)
            out_ref[b] = x.astype(out_ref.dtype)

    return kernel


# ----------------------------------------------------------------------------
# JAX glue (sparse graph bookkeeping, padding, pallas_call wrappers)
# ----------------------------------------------------------------------------
def build_gcn_adj_padded(edge_index, num_nodes, n_rows, n_cols):
    """Dense normalized adjacency D^-1/2 (A + I) D^-1/2, scattered once directly
    into the padded bf16 layout the GCN kernel streams.
    NOTE: assumes edge_index has no duplicate edges (duplicates are double-counted)."""
    idx = jnp.arange(num_nodes, dtype=edge_index.dtype)
    row = jnp.concatenate([edge_index[0], idx])      # sources
    col = jnp.concatenate([edge_index[1], idx])      # targets
    deg = jnp.zeros((num_nodes,), jnp.float32).at[col].add(1.0)
    dinv = jax.lax.rsqrt(deg)
    norm = (dinv[row] * dinv[col]).astype(jnp.bfloat16)
    return jnp.zeros((n_rows, n_cols), jnp.bfloat16).at[col, row].add(norm)


def to_dense_batch_jax(arrays, batch, num_graphs, n_max):
    """O(N) dense batching. Assumes `batch` is sorted (graph-contiguous), as in
    torch_geometric.to_dense_batch."""
    n = batch.shape[0]
    counts = jnp.zeros((num_graphs,), jnp.int32).at[batch].add(1)
    starts = jnp.concatenate([jnp.zeros((1,), jnp.int32),
                              jnp.cumsum(counts)[:-1].astype(jnp.int32)])
    pos = jnp.arange(n, dtype=jnp.int32) - starts[batch]
    dense = [jnp.zeros((num_graphs, n_max, a.shape[1]), a.dtype).at[batch, pos].set(a)
             for a in arrays]
    mask = jnp.zeros((num_graphs, n_max), jnp.float32).at[batch, pos].set(1.0)
    return dense, mask


def _pad_heads(a, axis, num_heads, dh, dh_pad):
    """Zero-pad a merged feature axis of size H*dh to H*dh_pad (head-major layout)."""
    shp = a.shape
    a = a.reshape(shp[:axis] + (num_heads, dh) + shp[axis + 1:])
    pad = [(0, 0)] * a.ndim
    pad[axis + 1] = (0, dh_pad - dh)
    a = jnp.pad(a, pad)
    return a.reshape(shp[:axis] + (num_heads * dh_pad,) + shp[axis + 1:])


def mab_forward(params, Q, graph, num_heads, n_max):
    """num_heads and n_max (max #nodes per graph) are static (jit: static_argnums=(3, 4))."""
    x, edge_index, batch = graph
    B, nq, dim_Q = Q.shape
    dim_V = params["wq"].shape[1]
    H = num_heads
    dh = dim_V // H
    scale = 1.0 / math.sqrt(dim_V)       # PyTorch divides scores by sqrt(dim_V)

    # per-head padding so the merged feature dim is a multiple of 128 (lane-dense)
    lane_q = 128 // math.gcd(H, 128)
    dh_pad = _round_up(dh, lane_q)
    dv_pad = H * dh_pad

    # generation-aware tile caps (v5e/v6e: 128 MiB VMEM, v7x: 64 MiB)
    big_vmem = _vmem_capacity_bytes() >= (96 << 20)
    tm_cap, tk_cap = (1024, 2048) if big_vmem else (512, 1024)

    # ---- GCNConv K/V (HBM-streaming tiled A_hat @ X, Wk/Wv fused in epilogue) ----
    n, dim_K = x.shape
    tm = min(tm_cap, _round_up(n, 8))
    tk = min(tk_cap, _round_up(n, 128))
    n_rows, n_cols = _round_up(n, tm), _round_up(n, tk)

    a_pad = build_gcn_adj_padded(edge_index, n, n_rows, n_cols)          # bf16, padded
    x_pad = jnp.zeros((n_cols, dim_K), jnp.bfloat16).at[:n].set(x.astype(jnp.bfloat16))

    # fold the 1/sqrt(dim_V) score scale into the K projection (K only feeds scores)
    wk_p = _pad_heads(params["wk"] * scale, 1, H, dh, dh_pad).astype(jnp.bfloat16)
    bk_p = _pad_heads(params["bk"] * scale, 1, H, dh, dh_pad)
    wv_p = _pad_heads(params["wv"], 1, H, dh, dh_pad).astype(jnp.bfloat16)
    bv_p = _pad_heads(params["bv"], 1, H, dh, dh_pad)

    k_nodes, v_nodes = gcn_kv(a_pad, x_pad, wk_p, bk_p, wv_p, bv_p, tm=tm, tk=tk)
    k_nodes, v_nodes = k_nodes[:n], v_nodes[:n]

    # ---- dense batch, kept in merged lane-dense (nk, H*dh_pad) layout -----------
    # TODO(synk): fuse this scatter into the attention kernel with
    #             PrefetchScalarGridSpec per-graph node offsets to avoid the
    #             K/V HBM round-trip entirely.
    n_max_pad = _round_up(n_max, 8)
    per_graph_bytes = (2 * n_max_pad * dv_pad * 2 + nq * dv_pad * 4
                       + max(n_max_pad, 128) * 4 + nq * dim_Q * 4)
    budget = _vmem_cap_with_headroom() // 3
    Bblk = min(8, max(1, B // 2), max(1, budget // max(per_graph_bytes, 1)))
    B_pad = _round_up(B, Bblk)

    (K, V), mask = to_dense_batch_jax((k_nodes, v_nodes), batch, B_pad, n_max_pad)
    bias = ((mask - 1.0) * 1e9).reshape(B_pad, 1, n_max_pad)   # additive mask bias
    Q_in = Q if B_pad == B else jnp.zeros((B_pad, nq, dim_Q), Q.dtype).at[:B].set(Q)

    # ---- fused fc_q + masked MHA + residual + LN0 + fc_o + ReLU + LN1 kernel ----
    wq_m = _pad_heads(params["wq"], 1, H, dh, dh_pad).astype(jnp.bfloat16)
    bq_m = _pad_heads(params["bq"], 1, H, dh, dh_pad)
    wo_m = _pad_heads(_pad_heads(params["wo"], 1, H, dh, dh_pad),
                      0, H, dh, dh_pad).astype(jnp.bfloat16)
    bo_m = _pad_heads(params["bo"], 1, H, dh, dh_pad)
    g0_m = _pad_heads(params["g0"], 1, H, dh, dh_pad)
    be0_m = _pad_heads(params["be0"], 1, H, dh, dh_pad)
    g1_m = _pad_heads(params["g1"], 1, H, dh, dh_pad)
    be1_m = _pad_heads(params["be1"], 1, H, dh, dh_pad)
    fmask = ((jnp.arange(dv_pad) % dh_pad) < dh).astype(jnp.float32).reshape(1, dv_pad)

    vspec = pl.BlockSpec((1, dv_pad), lambda i: (0, 0))
    attn_bytes = (Bblk * nq * dim_Q * 4
                  + 2 * Bblk * n_max_pad * dv_pad * 2
                  + Bblk * max(n_max_pad, 128) * 4
                  + Bblk * nq * dv_pad * 4
                  + dim_Q * dv_pad * 2 + dv_pad * dv_pad * 2 + 8 * dv_pad * 4
                  + 3 * Bblk * nq * max(n_max_pad, 128) * 4     # f32 softmax temporaries
                  + 2 * Bblk * nq * dv_pad * 4)                 # qh / LN temporaries

    out_p = pl.pallas_call(
        make_fused_attention_kernel(H, dh, dh_pad, dim_V, Bblk),
        out_shape=jax.ShapeDtypeStruct((B_pad, nq, dv_pad), jnp.float32),
        grid=(B_pad // Bblk,),
        in_specs=[
            pl.BlockSpec((Bblk, nq, dim_Q), lambda i: (i, 0, 0)),
            pl.BlockSpec((dim_Q, dv_pad), lambda i: (0, 0)),
            vspec,                                                    # bq
            pl.BlockSpec((Bblk, n_max_pad, dv_pad), lambda i: (i, 0, 0)),
            pl.BlockSpec((Bblk, n_max_pad, dv_pad), lambda i: (i, 0, 0)),
            pl.BlockSpec((Bblk, 1, n_max_pad), lambda i: (i, 0, 0)),
            vspec, vspec,                                             # g0, be0
            pl.BlockSpec((dv_pad, dv_pad), lambda i: (0, 0)),         # wo
            vspec, vspec, vspec, vspec,                               # bo, g1, be1, fmask
        ],
        out_specs=pl.BlockSpec((Bblk, nq, dv_pad), lambda i: (i, 0, 0)),
        compiler_params=_compiler_params(("parallel",), attn_bytes),
    )(Q_in, wq_m, bq_m, K, V, bias, g0_m, be0_m, wo_m, bo_m, g1_m, be1_m, fmask)

    # strip batch padding and per-head feature padding
    out = out_p[:B].reshape(B, nq, H, dh_pad)[..., :dh].reshape(B, nq, dim_V)
    return out


def init_params(key, dim_Q, dim_K, dim_V):
    ks = jax.random.split(key, 6)
    s = 0.1
    return {
        "wq": s * jax.random.normal(ks[0], (dim_Q, dim_V), jnp.float32),
        "bq": s * jax.random.normal(ks[1], (1, dim_V), jnp.float32),
        "wk": s * jax.random.normal(ks[2], (dim_K, dim_V), jnp.float32),
        "bk": jnp.zeros((1, dim_V), jnp.float32),
        "wv": s * jax.random.normal(ks[3], (dim_K, dim_V), jnp.float32),
        "bv": jnp.zeros((1, dim_V), jnp.float32),
        "wo": s * jax.random.normal(ks[4], (dim_V, dim_V), jnp.float32),
        "bo": s * jax.random.normal(ks[5], (1, dim_V), jnp.float32),
        "g0": jnp.ones((1, dim_V), jnp.float32),
        "be0": jnp.zeros((1, dim_V), jnp.float32),
        "g1": jnp.ones((1, dim_V), jnp.float32),
        "be1": jnp.zeros((1, dim_V), jnp.float32),
    }


if __name__ == "__main__":
    # Small shapes consistent with the module:
    #   B=2 graphs, n_q=4 query tokens, dim_Q=8, dim_K=8, dim_V=32, heads=4.
    B, NQ, DIM_Q, DIM_K, DIM_V, HEADS = 2, 4, 8, 8, 32, 4
    nodes_per_graph = (5, 7)
    N = sum(nodes_per_graph)
    N_MAX = max(nodes_per_graph)          # static max #nodes per graph

    key = jax.random.PRNGKey(0)
    kq, kx, kp = jax.random.split(key, 3)

    Q = jax.random.normal(kq, (B, NQ, DIM_Q), jnp.float32)
    x = jax.random.normal(kx, (N, DIM_K), jnp.float32)
    batch = jnp.array([0] * nodes_per_graph[0] + [1] * nodes_per_graph[1], jnp.int32)

    # undirected ring edges inside each graph (both directions, no duplicates)
    src, dst = [], []
    offset = 0
    for n_g in nodes_per_graph:
        for i in range(n_g):
            a, b = offset + i, offset + (i + 1) % n_g
            src += [a, b]
            dst += [b, a]
        offset += n_g
    edge_index = jnp.array([src, dst], jnp.int32)

    params = init_params(kp, DIM_Q, DIM_K, DIM_V)

    fwd = jax.jit(mab_forward, static_argnums=(3, 4))
    out = fwd(params, Q, (x, edge_index, batch), HEADS, N_MAX)
    out = jax.block_until_ready(out)
    assert out.shape == (B, NQ, DIM_V)
    assert bool(jnp.all(jnp.isfinite(out)))
    print("KERNEL_OK")
</pallas_src>

<mosaic_0001>
module attributes {stable_mosaic.version = 11 : i64} {
  func.func @gcn_kernel(%arg0: i32, %arg1: i32, %arg2: memref<16x128xbf16, #tpu.memory_space<vmem>>, %arg3: memref<128x8xbf16, #tpu.memory_space<vmem>>, %arg4: memref<8x128xbf16, #tpu.memory_space<vmem>>, %arg5: memref<1x128xf32, #tpu.memory_space<vmem>>, %arg6: memref<8x128xbf16, #tpu.memory_space<vmem>>, %arg7: memref<1x128xf32, #tpu.memory_space<vmem>>, %arg8: memref<16x128xbf16, #tpu.memory_space<vmem>>, %arg9: memref<16x128xbf16, #tpu.memory_space<vmem>>, %arg10: memref<16x8xf32, #tpu.memory_space<vmem>>) attributes {dimension_semantics = [#tpu.dimension_semantics<parallel>, #tpu.dimension_semantics<arbitrary>], iteration_bounds = array<i64: 1, 1>, scalar_prefetch = 0 : i64, scratch_operands = 1 : i64, tpu.core_type = #tpu.core_type<tc>, window_params = [{transform_indices = @transform_0, window_bounds = array<i64: 16, 128>}, {transform_indices = @transform_1, window_bounds = array<i64: 128, 8>}, {pipeline_mode = #tpu.pipeline_mode<synchronous>, transform_indices = @transform_2, window_bounds = array<i64: 8, 128>}, {pipeline_mode = #tpu.pipeline_mode<synchronous>, transform_indices = @transform_3, window_bounds = array<i64: 1, 128>}, {pipeline_mode = #tpu.pipeline_mode<synchronous>, transform_indices = @transform_4, window_bounds = array<i64: 8, 128>}, {pipeline_mode = #tpu.pipeline_mode<synchronous>, transform_indices = @transform_5, window_bounds = array<i64: 1, 128>}, {transform_indices = @transform_6, window_bounds = array<i64: 16, 128>}, {transform_indices = @transform_7, window_bounds = array<i64: 16, 128>}]} {
    %c0_i32 = arith.constant 0 : i32
    %0 = arith.cmpi eq, %arg1, %c0_i32 : i32
    %1 = arith.extui %0 : i1 to i32
    %c0_i32_0 = arith.constant 0 : i32
    %2 = arith.cmpi ne, %1, %c0_i32_0 : i32
    scf.if %2 {
      %cst_10 = arith.constant 0.000000e+00 : f32
      %12 = vector.broadcast %cst_10 : f32 to vector<16x8xf32>
      %c0_11 = arith.constant 0 : index
      %c0_12 = arith.constant 0 : index
      %13 = vector.load %arg10[%c0_11, %c0_12] : memref<16x8xf32, #tpu.memory_space<vmem>>, vector<16x8xf32>
      tpu.vector_store %arg10[%c0_11, %c0_12], %12 {strides = array<i32>} : memref<16x8xf32, #tpu.memory_space<vmem>>, vector<16x8xf32>,
    } else {
    }
    %c0 = arith.constant 0 : index
    %c0_1 = arith.constant 0 : index
    %3 = vector.load %arg10[%c0, %c0_1] : memref<16x8xf32, #tpu.memory_space<vmem>>, vector<16x8xf32>
    %c0_2 = arith.constant 0 : index
    %c0_3 = arith.constant 0 : index
    %4 = vector.load %arg2[%c0_2, %c0_3] : memref<16x128xbf16, #tpu.memory_space<vmem>>, vector<16x128xbf16>
    %c0_4 = arith.constant 0 : index
    %c0_5 = arith.constant 0 : index
    %5 = vector.load %arg3[%c0_4, %c0_5] : memref<128x8xbf16, #tpu.memory_space<vmem>>, vector<128x8xbf16>
    %cst = arith.constant dense<0.000000e+00> : vector<16x8xf32>
    %6 = tpu.matmul %4, %5, %cst {dimension_numbers = #tpu.dot_dimension_numbers<[1], [0], [0], [1], [0, 0, 1, 1], [], []>} : vector<16x128xbf16>, vector<128x8xbf16>, vector<16x8xf32> -> vector<16x8xf32>
    %7 = arith.addf %3, %6 : vector<16x8xf32>
    %c0_6 = arith.constant 0 : index
    %c0_7 = arith.constant 0 : index
    %8 = vector.load %arg10[%c0_6, %c0_7] : memref<16x8xf32, #tpu.memory_space<vmem>>, vector<16x8xf32>
    tpu.vector_store %arg10[%c0_6, %c0_7], %7 {strides = array<i32>} : memref<16x8xf32, #tpu.memory_space<vmem>>, vector<16x8xf32>,
    %c0_i32_8 = arith.constant 0 : i32
    %9 = arith.cmpi eq, %arg1, %c0_i32_8 : i32
    %10 = arith.extui %9 : i1 to i32
    %c0_i32_9 = arith.constant 0 : i32
    %11 = arith.cmpi ne, %10, %c0_i32_9 : i32
    scf.if %11 {
      %c0_10 = arith.constant 0 : index
      %c0_11 = arith.constant 0 : index
      %12 = vector.load %arg10[%c0_10, %c0_11] : memref<16x8xf32, #tpu.memory_space<vmem>>, vector<16x8xf32>
      %13 = arith.truncf %12 : vector<16x8xf32> to vector<16x8xbf16>
      %c0_12 = arith.constant 0 : index
      %c0_13 = arith.constant 0 : index
      %14 = vector.load %arg4[%c0_12, %c0_13] : memref<8x128xbf16, #tpu.memory_space<vmem>>, vector<8x128xbf16>
      %cst_14 = arith.constant dense<0.000000e+00> : vector<16x128xf32>
      %15 = tpu.matmul %13, %14, %cst_14 {dimension_numbers = #tpu.dot_dimension_numbers<[1], [0], [0], [1], [0, 0, 1, 1], [], []>} : vector<16x8xbf16>, vector<8x128xbf16>, vector<16x128xf32> -> vector<16x128xf32>
      %c0_15 = arith.constant 0 : index
      %c0_16 = arith.constant 0 : index
      %16 = vector.load %arg5[%c0_15, %c0_16] : memref<1x128xf32, #tpu.memory_space<vmem>>, vector<1x128xf32>
      %17 = vector.broadcast %16 : vector<1x128xf32> to vector<16x128xf32>
      %18 = arith.addf %15, %17 : vector<16x128xf32>
      %19 = arith.truncf %18 : vector<16x128xf32> to vector<16x128xbf16>
      %c0_17 = arith.constant 0 : index
      %c0_18 = arith.constant 0 : index
      %20 = vector.load %arg8[%c0_17, %c0_18] : memref<16x128xbf16, #tpu.memory_space<vmem>>, vector<16x128xbf16>
      tpu.vector_store %arg8[%c0_17, %c0_18], %19 {strides = array<i32>} : memref<16x128xbf16, #tpu.memory_space<vmem>>, vector<16x128xbf16>,
      %c0_19 = arith.constant 0 : index
      %c0_20 = arith.constant 0 : index
      %21 = vector.load %arg6[%c0_19, %c0_20] : memref<8x128xbf16, #tpu.memory_space<vmem>>, vector<8x128xbf16>
      %cst_21 = arith.constant dense<0.000000e+00> : vector<16x128xf32>
      %22 = tpu.matmul %13, %21, %cst_21 {dimension_numbers = #tpu.dot_dimension_numbers<[1], [0], [0], [1], [0, 0, 1, 1], [], []>} : vector<16x8xbf16>, vector<8x128xbf16>, vector<16x128xf32> -> vector<16x128xf32>
      %c0_22 = arith.constant 0 : index
      %c0_23 = arith.constant 0 : index
      %23 = vector.load %arg7[%c0_22, %c0_23] : memref<1x128xf32, #tpu.memory_space<vmem>>, vector<1x128xf32>
      %24 = vector.broadcast %23 : vector<1x128xf32> to vector<16x128xf32>
      %25 = arith.addf %22, %24 : vector<16x128xf32>
      %26 = arith.truncf %25 : vector<16x128xf32> to vector<16x128xbf16>
      %c0_24 = arith.constant 0 : index
      %c0_25 = arith.constant 0 : index
      %27 = vector.load %arg9[%c0_24, %c0_25] : memref<16x128xbf16, #tpu.memory_space<vmem>>, vector<16x128xbf16>
      tpu.vector_store %arg9[%c0_24, %c0_25], %26 {strides = array<i32>} : memref<16x128xbf16, #tpu.memory_space<vmem>>, vector<16x128xbf16>,
    } else {
    }
    return
  }
  func.func @transform_0(%arg0: i32, %arg1: i32) -> (i32, i32) {
    %c0_i32 = arith.constant 0 : i32
    return %arg0, %arg1 : i32, i32
  }
  func.func @transform_1(%arg0: i32, %arg1: i32) -> (i32, i32) {
    %c0_i32 = arith.constant 0 : i32
    %c0_i32_0 = arith.constant 0 : i32
    return %arg1, %c0_i32 : i32, i32
  }
  func.func @transform_2(%arg0: i32, %arg1: i32) -> (i32, i32) {
    %c0_i32 = arith.constant 0 : i32
    %c0_i32_0 = arith.constant 0 : i32
    %c0_i32_1 = arith.constant 0 : i32
    return %c0_i32, %c0_i32_0 : i32, i32
  }
  func.func @transform_3(%arg0: i32, %arg1: i32) -> (i32, i32) {
    %c0_i32 = arith.constant 0 : i32
    %c0_i32_0 = arith.constant 0 : i32
    %c0_i32_1 = arith.constant 0 : i32
    return %c0_i32, %c0_i32_0 : i32, i32
  }
  func.func @transform_4(%arg0: i32, %arg1: i32) -> (i32, i32) {
    %c0_i32 = arith.constant 0 : i32
    %c0_i32_0 = arith.constant 0 : i32
    %c0_i32_1 = arith.constant 0 : i32
    return %c0_i32, %c0_i32_0 : i32, i32
  }
  func.func @transform_5(%arg0: i32, %arg1: i32) -> (i32, i32) {
    %c0_i32 = arith.constant 0 : i32
    %c0_i32_0 = arith.constant 0 : i32
    %c0_i32_1 = arith.constant 0 : i32
    return %c0_i32, %c0_i32_0 : i32, i32
  }
  func.func @transform_6(%arg0: i32, %arg1: i32) -> (i32, i32) {
    %c0_i32 = arith.constant 0 : i32
    %c0_i32_0 = arith.constant 0 : i32
    return %arg0, %c0_i32 : i32, i32
  }
  func.func @transform_7(%arg0: i32, %arg1: i32) -> (i32, i32) {
    %c0_i32 = arith.constant 0 : i32
    %c0_i32_0 = arith.constant 0 : i32
    return %arg0, %c0_i32 : i32, i32
  }
}

module attributes {stable_mosaic.version = 11 : i64} {
  func.func @kernel(%arg0: i32, %arg1: memref<1x4x8xf32, #tpu.memory_space<vmem>>, %arg2: memref<8x128xbf16, #tpu.memory_space<vmem>>, %arg3: memref<1x128xf32, #tpu.memory_space<vmem>>, %arg4: memref<1x8x128xbf16, #tpu.memory_space<vmem>>, %arg5: memref<1x8x128xbf16, #tpu.memory_space<vmem>>, %arg6: memref<1x1x8xf32, #tpu.memory_space<vmem>>, %arg7: memref<1x128xf32, #tpu.memory_space<vmem>>, %arg8: memref<1x128xf32, #tpu.memory_space<vmem>>, %arg9: memref<128x128xbf16, #tpu.memory_space<vmem>>, %arg10: memref<1x128xf32, #tpu.memory_space<vmem>>, %arg11: memref<1x128xf32, #tpu.memory_space<vmem>>, %arg12: memref<1x128xf32, #tpu.memory_space<vmem>>, %arg13: memref<1x128xf32, #tpu.memory_space<vmem>>, %arg14: memref<1x4x128xf32, #tpu.memory_space<vmem>>) attributes {dimension_semantics = [#tpu.dimension_semantics<parallel>], iteration_bounds = array<i64: 2>, scalar_prefetch = 0 : i64, scratch_operands = 0 : i64, tpu.core_type = #tpu.core_type<tc>, window_params = [{transform_indices = @transform_0, window_bounds = array<i64: 1, 4, 8>}, {pipeline_mode = #tpu.pipeline_mode<synchronous>, transform_indices = @transform_1, window_bounds = array<i64: 8, 128>}, {pipeline_mode = #tpu.pipeline_mode<synchronous>, transform_indices = @transform_2, window_bounds = array<i64: 1, 128>}, {transform_indices = @transform_3, window_bounds = array<i64: 1, 8, 128>}, {transform_indices = @transform_4, window_bounds = array<i64: 1, 8, 128>}, {transform_indices = @transform_5, window_bounds = array<i64: 1, 1, 8>}, {pipeline_mode = #tpu.pipeline_mode<synchronous>, transform_indices = @transform_6, window_bounds = array<i64: 1, 128>}, {pipeline_mode = #tpu.pipeline_mode<synchronous>, transform_indices = @transform_7, window_bounds = array<i64: 1, 128>}, {pipeline_mode = #tpu.pipeline_mode<synchronous>, transform_indices = @transform_8, window_bounds = array<i64: 128, 128>}, {pipeline_mode = #tpu.pipeline_mode<synchronous>, transform_indices = @transform_9, window_bounds = array<i64: 1, 128>}, {pipeline_mode = #tpu.pipeline_mode<synchronous>, transform_indices = @transform_10, window_bounds = array<i64: 1, 128>}, {pipeline_mode = #tpu.pipeline_mode<synchronous>, transform_indices = @transform_11, window_bounds = array<i64: 1, 128>}, {pipeline_mode = #tpu.pipeline_mode<synchronous>, transform_indices = @transform_12, window_bounds = array<i64: 1, 128>}, {transform_indices = @transform_13, window_bounds = array<i64: 1, 4, 128>}]} {
    %c0 = arith.constant 0 : index
    %c0_0 = arith.constant 0 : index
    %0 = vector.load %arg2[%c0, %c0_0] : memref<8x128xbf16, #tpu.memory_space<vmem>>, vector<8x128xbf16>
    %c0_1 = arith.constant 0 : index
    %c0_2 = arith.constant 0 : index
    %1 = vector.load %arg3[%c0_1, %c0_2] : memref<1x128xf32, #tpu.memory_space<vmem>>, vector<1x128xf32>
    %c0_3 = arith.constant 0 : index
    %c0_4 = arith.constant 0 : index
    %2 = vector.load %arg9[%c0_3, %c0_4] : memref<128x128xbf16, #tpu.memory_space<vmem>>, vector<128x128xbf16>
    %c0_5 = arith.constant 0 : index
    %c0_6 = arith.constant 0 : index
    %3 = vector.load %arg10[%c0_5, %c0_6] : memref<1x128xf32, #tpu.memory_space<vmem>>, vector<1x128xf32>
    %c0_7 = arith.constant 0 : index
    %c0_8 = arith.constant 0 : index
    %4 = vector.load %arg7[%c0_7, %c0_8] : memref<1x128xf32, #tpu.memory_space<vmem>>, vector<1x128xf32>
    %c0_9 = arith.constant 0 : index
    %c0_10 = arith.constant 0 : index
    %5 = vector.load %arg8[%c0_9, %c0_10] : memref<1x128xf32, #tpu.memory_space<vmem>>, vector<1x128xf32>
    %c0_11 = arith.constant 0 : index
    %c0_12 = arith.constant 0 : index
    %6 = vector.load %arg11[%c0_11, %c0_12] : memref<1x128xf32, #tpu.memory_space<vmem>>, vector<1x128xf32>
    %c0_13 = arith.constant 0 : index
    %c0_14 = arith.constant 0 : index
    %7 = vector.load %arg12[%c0_13, %c0_14] : memref<1x128xf32, #tpu.memory_space<vmem>>, vector<1x128xf32>
    %c0_15 = arith.constant 0 : index
    %c0_16 = arith.constant 0 : index
    %8 = vector.load %arg13[%c0_15, %c0_16] : memref<1x128xf32, #tpu.memory_space<vmem>>, vector<1x128xf32>
    %c0_17 = arith.constant 0 : index
    %c0_18 = arith.constant 0 : index
    %c0_19 = arith.constant 0 : index
    %9 = vector.load %arg1[%c0_17, %c0_18, %c0_19] : memref<1x4x8xf32, #tpu.memory_space<vmem>>, vector<1x4x8xf32>
    %10 = vector.shape_cast %9 : vector<1x4x8xf32> to vector<4x8xf32>
    %11 = arith.truncf %10 : vector<4x8xf32> to vector<4x8xbf16>
    %cst = arith.constant dense<0.000000e+00> : vector<4x128xf32>
    %12 = tpu.matmul %11, %0, %cst {dimension_numbers = #tpu.dot_dimension_numbers<[1], [0], [0], [1], [0, 0, 1, 1], [], []>} : vector<4x8xbf16>, vector<8x128xbf16>, vector<4x128xf32> -> vector<4x128xf32>
    %13 = vector.broadcast %1 : vector<1x128xf32> to vector<4x128xf32>
    %14 = arith.addf %12, %13 : vector<4x128xf32>
    %15 = arith.truncf %14 : vector<4x128xf32> to vector<4x128xbf16>
    %c0_20 = arith.constant 0 : index
    %c0_21 = arith.constant 0 : index
    %c0_22 = arith.constant 0 : index
    %16 = vector.load %arg4[%c0_20, %c0_21, %c0_22] : memref<1x8x128xbf16, #tpu.memory_space<vmem>>, vector<1x8x128xbf16>
    %17 = vector.shape_cast %16 : vector<1x8x128xbf16> to vector<8x128xbf16>
    %c0_23 = arith.constant 0 : index
    %c0_24 = arith.constant 0 : index
    %c0_25 = arith.constant 0 : index
    %18 = vector.load %arg5[%c0_23, %c0_24, %c0_25] : memref<1x8x128xbf16, #tpu.memory_space<vmem>>, vector<1x8x128xbf16>
    %19 = vector.shape_cast %18 : vector<1x8x128xbf16> to vector<8x128xbf16>
    %c0_26 = arith.constant 0 : index
    %c0_27 = arith.constant 0 : index
    %c0_28 = arith.constant 0 : index
    %20 = vector.load %arg6[%c0_26, %c0_27, %c0_28] : memref<1x1x8xf32, #tpu.memory_space<vmem>>, vector<1x1x8xf32>
    %21 = vector.shape_cast %20 : vector<1x1x8xf32> to vector<1x8xf32>
    %22 = vector.extract_strided_slice %15 {offsets = [0, 0], sizes = [4, 32], strides = [1, 1]} : vector<4x128xbf16> to vector<4x32xbf16>
    %23 = vector.extract_strided_slice %17 {offsets = [0, 0], sizes = [8, 32], strides = [1, 1]} : vector<8x128xbf16> to vector<8x32xbf16>
    %24 = vector.extract_strided_slice %19 {offsets = [0, 0], sizes = [8, 32], strides = [1, 1]} : vector<8x128xbf16> to vector<8x32xbf16>
    %cst_29 = arith.constant dense<0.000000e+00> : vector<4x8xf32>
    %25 = tpu.matmul %22, %23, %cst_29 {dimension_numbers = #tpu.dot_dimension_numbers<[1], [1], [0], [0], [0, 0, 1, 0], [], []>} : vector<4x32xbf16>, vector<8x32xbf16>, vector<4x8xf32> -> vector<4x8xf32>
    %26 = vector.broadcast %21 : vector<1x8xf32> to vector<4x8xf32>
    %27 = arith.addf %25, %26 : vector<4x8xf32>
    %cst_30 = arith.constant dense<0xFF800000> : vector<4xf32>
    %28 = vector.multi_reduction <maximumf>, %27, %cst_30 [1] : vector<4x8xf32> to vector<4xf32>
    %29 = vector.shape_cast %28 : vector<4xf32> to vector<4x1xf32>
    %30 = vector.broadcast %29 : vector<4x1xf32> to vector<4x8xf32>
    %31 = arith.subf %27, %30 : vector<4x8xf32>
    %32 = math.exp %31 : vector<4x8xf32>
    %cst_31 = arith.constant dense<0.000000e+00> : vector<4xf32>
    %33 = vector.multi_reduction <add>, %32, %cst_31 [1] : vector<4x8xf32> to vector<4xf32>
    %34 = vector.shape_cast %33 : vector<4xf32> to vector<4x1xf32>
    %35 = tpu.reciprocal %34 {approx = true} : vector<4x1xf32> -> vector<4x1xf32>
    %36 = vector.broadcast %35 : vector<4x1xf32> to vector<4x8xf32>
    %37 = arith.mulf %32, %36 : vector<4x8xf32>
    %38 = arith.truncf %37 : vector<4x8xf32> to vector<4x8xbf16>
    %cst_32 = arith.constant dense<0.000000e+00> : vector<4x32xf32>
    %39 = tpu.matmul %38, %24, %cst_32 {dimension_numbers = #tpu.dot_dimension_numbers<[1], [0], [0], [1], [0, 0, 1, 1], [], []>} : vector<4x8xbf16>, vector<8x32xbf16>, vector<4x32xf32> -> vector<4x32xf32>
    %40 = vector.extract_strided_slice %15 {offsets = [0, 32], sizes = [4, 32], strides = [1, 1]} : vector<4x128xbf16> to vector<4x32xbf16>
    %41 = vector.extract_strided_slice %17 {offsets = [0, 32], sizes = [8, 32], strides = [1, 1]} : vector<8x128xbf16> to vector<8x32xbf16>
    %42 = vector.extract_strided_slice %19 {offsets = [0, 32], sizes = [8, 32], strides = [1, 1]} : vector<8x128xbf16> to vector<8x32xbf16>
    %cst_33 = arith.constant dense<0.000000e+00> : vector<4x8xf32>
    %43 = tpu.matmul %40, %41, %cst_33 {dimension_numbers = #tpu.dot_dimension_numbers<[1], [1], [0], [0], [0, 0, 1, 0], [], []>} : vector<4x32xbf16>, vector<8x32xbf16>, vector<4x8xf32> -> vector<4x8xf32>
    %44 = vector.broadcast %21 : vector<1x8xf32> to vector<4x8xf32>
    %45 = arith.addf %43, %44 : vector<4x8xf32>
    %cst_34 = arith.constant dense<0xFF800000> : vector<4xf32>
    %46 = vector.multi_reduction <maximumf>, %45, %cst_34 [1] : vector<4x8xf32> to vector<4xf32>
    %47 = vector.shape_cast %46 : vector<4xf32> to vector<4x1xf32>
    %48 = vector.broadcast %47 : vector<4x1xf32> to vector<4x8xf32>
    %49 = arith.subf %45, %48 : vector<4x8xf32>
    %50 = math.exp %49 : vector<4x8xf32>
    %cst_35 = arith.constant dense<0.000000e+00> : vector<4xf32>
    %51 = vector.multi_reduction <add>, %50, %cst_35 [1] : vector<4x8xf32> to vector<4xf32>
    %52 = vector.shape_cast %51 : vector<4xf32> to vector<4x1xf32>
    %53 = tpu.reciprocal %52 {approx = true} : vector<4x1xf32> -> vector<4x1xf32>
    %54 = vector.broadcast %53 : vector<4x1xf32> to vector<4x8xf32>
    %55 = arith.mulf %50, %54 : vector<4x8xf32>
    %56 = arith.truncf %55 : vector<4x8xf32> to vector<4x8xbf16>
    %cst_36 = arith.constant dense<0.000000e+00> : vector<4x32xf32>
    %57 = tpu.matmul %56, %42, %cst_36 {dimension_numbers = #tpu.dot_dimension_numbers<[1], [0], [0], [1], [0, 0, 1, 1], [], []>} : vector<4x8xbf16>, vector<8x32xbf16>, vector<4x32xf32> -> vector<4x32xf32>
    %58 = vector.extract_strided_slice %15 {offsets = [0, 64], sizes = [4, 32], strides = [1, 1]} : vector<4x128xbf16> to vector<4x32xbf16>
    %59 = vector.extract_strided_slice %17 {offsets = [0, 64], sizes = [8, 32], strides = [1, 1]} : vector<8x128xbf16> to vector<8x32xbf16>
    %60 = vector.extract_strided_slice %19 {offsets = [0, 64], sizes = [8, 32], strides = [1, 1]} : vector<8x128xbf16> to vector<8x32xbf16>
    %cst_37 = arith.constant dense<0.000000e+00> : vector<4x8xf32>
    %61 = tpu.matmul %58, %59, %cst_37 {dimension_numbers = #tpu.dot_dimension_numbers<[1], [1], [0], [0], [0, 0, 1, 0], [], []>} : vector<4x32xbf16>, vector<8x32xbf16>, vector<4x8xf32> -> vector<4x8xf32>
    %62 = vector.broadcast %21 : vector<1x8xf32> to vector<4x8xf32>
    %63 = arith.addf %61, %62 : vector<4x8xf32>
    %cst_38 = arith.constant dense<0xFF800000> : vector<4xf32>
    %64 = vector.multi_reduction <maximumf>, %63, %cst_38 [1] : vector<4x8xf32> to vector<4xf32>
    %65 = vector.shape_cast %64 : vector<4xf32> to vector<4x1xf32>
    %66 = vector.broadcast %65 : vector<4x1xf32> to vector<4x8xf32>
    %67 = arith.subf %63, %66 : vector<4x8xf32>
    %68 = math.exp %67 : vector<4x8xf32>
    %cst_39 = arith.constant dense<0.000000e+00> : vector<4xf32>
    %69 = vector.multi_reduction <add>, %68, %cst_39 [1] : vector<4x8xf32> to vector<4xf32>
    %70 = vector.shape_cast %69 : vector<4xf32> to vector<4x1xf32>
    %71 = tpu.reciprocal %70 {approx = true} : vector<4x1xf32> -> vector<4x1xf32>
    %72 = vector.broadcast %71 : vector<4x1xf32> to vector<4x8xf32>
    %73 = arith.mulf %68, %72 : vector<4x8xf32>
    %74 = arith.truncf %73 : vector<4x8xf32> to vector<4x8xbf16>
    %cst_40 = arith.constant dense<0.000000e+00> : vector<4x32xf32>
    %75 = tpu.matmul %74, %60, %cst_40 {dimension_numbers = #tpu.dot_dimension_numbers<[1], [0], [0], [1], [0, 0, 1, 1], [], []>} : vector<4x8xbf16>, vector<8x32xbf16>, vector<4x32xf32> -> vector<4x32xf32>
    %76 = vector.extract_strided_slice %15 {offsets = [0, 96], sizes = [4, 32], strides = [1, 1]} : vector<4x128xbf16> to vector<4x32xbf16>
    %77 = vector.extract_strided_slice %17 {offsets = [0, 96], sizes = [8, 32], strides = [1, 1]} : vector<8x128xbf16> to vector<8x32xbf16>
    %78 = vector.extract_strided_slice %19 {offsets = [0, 96], sizes = [8, 32], strides = [1, 1]} : vector<8x128xbf16> to vector<8x32xbf16>
    %cst_41 = arith.constant dense<0.000000e+00> : vector<4x8xf32>
    %79 = tpu.matmul %76, %77, %cst_41 {dimension_numbers = #tpu.dot_dimension_numbers<[1], [1], [0], [0], [0, 0, 1, 0], [], []>} : vector<4x32xbf16>, vector<8x32xbf16>, vector<4x8xf32> -> vector<4x8xf32>
    %80 = vector.broadcast %21 : vector<1x8xf32> to vector<4x8xf32>
    %81 = arith.addf %79, %80 : vector<4x8xf32>
    %cst_42 = arith.constant dense<0xFF800000> : vector<4xf32>
    %82 = vector.multi_reduction <maximumf>, %81, %cst_42 [1] : vector<4x8xf32> to vector<4xf32>
    %83 = vector.shape_cast %82 : vector<4xf32> to vector<4x1xf32>
    %84 = vector.broadcast %83 : vector<4x1xf32> to vector<4x8xf32>
    %85 = arith.subf %81, %84 : vector<4x8xf32>
    %86 = math.exp %85 : vector<4x8xf32>
    %cst_43 = arith.constant dense<0.000000e+00> : vector<4xf32>
    %87 = vector.multi_reduction <add>, %86, %cst_43 [1] : vector<4x8xf32> to vector<4xf32>
    %88 = vector.shape_cast %87 : vector<4xf32> to vector<4x1xf32>
    %89 = tpu.reciprocal %88 {approx = true} : vector<4x1xf32> -> vector<4x1xf32>
    %90 = vector.broadcast %89 : vector<4x1xf32> to vector<4x8xf32>
    %91 = arith.mulf %86, %90 : vector<4x8xf32>
    %92 = arith.truncf %91 : vector<4x8xf32> to vector<4x8xbf16>
    %cst_44 = arith.constant dense<0.000000e+00> : vector<4x32xf32>
    %93 = tpu.matmul %92, %78, %cst_44 {dimension_numbers = #tpu.dot_dimension_numbers<[1], [0], [0], [1], [0, 0, 1, 1], [], []>} : vector<4x8xbf16>, vector<8x32xbf16>, vector<4x32xf32> -> vector<4x32xf32>
    %94 = tpu.concatenate %39, %57, %75, %93 in 1 : vector<4x32xf32>, vector<4x32xf32>, vector<4x32xf32>, vector<4x32xf32> -> vector<4x128xf32>
    %95 = arith.addf %14, %94 : vector<4x128xf32>
    %cst_45 = arith.constant dense<0.000000e+00> : vector<4xf32>
    %96 = vector.multi_reduction <add>, %95, %cst_45 [1] : vector<4x128xf32> to vector<4xf32>
    %97 = vector.shape_cast %96 : vector<4xf32> to vector<4x1xf32>
    %cst_46 = arith.constant 3.125000e-02 : f32
    %98 = vector.broadcast %cst_46 : f32 to vector<4x1xf32>
    %99 = arith.mulf %97, %98 : vector<4x1xf32>
    %100 = vector.broadcast %99 : vector<4x1xf32> to vector<4x128xf32>
    %101 = arith.subf %95, %100 : vector<4x128xf32>
    %102 = vector.broadcast %8 : vector<1x128xf32> to vector<4x128xf32>
    %103 = arith.mulf %101, %102 : vector<4x128xf32>
    %104 = arith.mulf %103, %103 : vector<4x128xf32>
    %cst_47 = arith.constant dense<0.000000e+00> : vector<4xf32>
    %105 = vector.multi_reduction <add>, %104, %cst_47 [1] : vector<4x128xf32> to vector<4xf32>
    %106 = vector.shape_cast %105 : vector<4xf32> to vector<4x1xf32>
    %cst_48 = arith.constant 3.125000e-02 : f32
    %107 = vector.broadcast %cst_48 : f32 to vector<4x1xf32>
    %108 = arith.mulf %106, %107 : vector<4x1xf32>
    %cst_49 = arith.constant 9.99999974E-6 : f32
    %109 = vector.broadcast %cst_49 : f32 to vector<4x1xf32>
    %110 = arith.addf %108, %109 : vector<4x1xf32>
    %111 = math.rsqrt %110 : vector<4x1xf32>
    %112 = vector.broadcast %111 : vector<4x1xf32> to vector<4x128xf32>
    %113 = arith.mulf %103, %112 : vector<4x128xf32>
    %114 = vector.broadcast %4 : vector<1x128xf32> to vector<4x128xf32>
    %115 = arith.mulf %113, %114 : vector<4x128xf32>
    %116 = vector.broadcast %5 : vector<1x128xf32> to vector<4x128xf32>
    %117 = arith.addf %115, %116 : vector<4x128xf32>
    %118 = arith.truncf %117 : vector<4x128xf32> to vector<4x128xbf16>
    %cst_50 = arith.constant dense<0.000000e+00> : vector<4x128xf32>
    %119 = tpu.matmul %118, %2, %cst_50 {dimension_numbers = #tpu.dot_dimension_numbers<[1], [0], [0], [1], [0, 0, 1, 1], [], []>} : vector<4x128xbf16>, vector<128x128xbf16>, vector<4x128xf32> -> vector<4x128xf32>
    %120 = vector.broadcast %3 : vector<1x128xf32> to vector<4x128xf32>
    %121 = arith.addf %119, %120 : vector<4x128xf32>
    %cst_51 = arith.constant 0.000000e+00 : f32
    %122 = vector.broadcast %cst_51 : f32 to vector<4x128xf32>
    %123 = arith.maximumf %121, %122 : vector<4x128xf32>
    %124 = arith.addf %117, %123 : vector<4x128xf32>
    %cst_52 = arith.constant dense<0.000000e+00> : vector<4xf32>
    %125 = vector.multi_reduction <add>, %124, %cst_52 [1] : vector<4x128xf32> to vector<4xf32>
    %126 = vector.shape_cast %125 : vector<4xf32> to vector<4x1xf32>
    %cst_53 = arith.constant 3.125000e-02 : f32
    %127 = vector.broadcast %cst_53 : f32 to vector<4x1xf32>
    %128 = arith.mulf %126, %127 : vector<4x1xf32>
    %129 = vector.broadcast %128 : vector<4x1xf32> to vector<4x128xf32>
    %130 = arith.subf %124, %129 : vector<4x128xf32>
    %131 = vector.broadcast %8 : vector<1x128xf32> to vector<4x128xf32>
    %132 = arith.mulf %130, %131 : vector<4x128xf32>
    %133 = arith.mulf %132, %132 : vector<4x128xf32>
    %cst_54 = arith.constant dense<0.000000e+00> : vector<4xf32>
    %134 = vector.multi_reduction <add>, %133, %cst_54 [1] : vector<4x128xf32> to vector<4xf32>
    %135 = vector.shape_cast %134 : vector<4xf32> to vector<4x1xf32>
    %cst_55 = arith.constant 3.125000e-02 : f32
    %136 = vector.broadcast %cst_55 : f32 to vector<4x1xf32>
    %137 = arith.mulf %135, %136 : vector<4x1xf32>
    %cst_56 = arith.constant 9.99999974E-6 : f32
    %138 = vector.broadcast %cst_56 : f32 to vector<4x1xf32>
    %139 = arith.addf %137, %138 : vector<4x1xf32>
    %140 = math.rsqrt %139 : vector<4x1xf32>
    %141 = vector.broadcast %140 : vector<4x1xf32> to vector<4x128xf32>
    %142 = arith.mulf %132, %141 : vector<4x128xf32>
    %143 = vector.broadcast %6 : vector<1x128xf32> to vector<4x128xf32>
    %144 = arith.mulf %142, %143 : vector<4x128xf32>
    %145 = vector.broadcast %7 : vector<1x128xf32> to vector<4x128xf32>
    %146 = arith.addf %144, %145 : vector<4x128xf32>
    %c0_57 = arith.constant 0 : index
    %c0_58 = arith.constant 0 : index
    %c0_59 = arith.constant 0 : index
    %147 = vector.load %arg14[%c0_57, %c0_58, %c0_59] : memref<1x4x128xf32, #tpu.memory_space<vmem>>, vector<1x4x128xf32>
    %148 = vector.shape_cast %147 : vector<1x4x128xf32> to vector<4x128xf32>
    %149 = vector.shape_cast %146 : vector<4x128xf32> to vector<1x4x128xf32>
    tpu.vector_store %arg14[%c0_57, %c0_58, %c0_59], %149 {strides = array<i32>} : memref<1x4x128xf32, #tpu.memory_space<vmem>>, vector<1x4x128xf32>,
    return
  }
  func.func @transform_0(%arg0: i32) -> (i32, i32, i32) {
    %c0_i32 = arith.constant 0 : i32
    %c0_i32_0 = arith.constant 0 : i32
    %c0_i32_1 = arith.constant 0 : i32
    return %arg0, %c0_i32, %c0_i32_0 : i32, i32, i32
  }
  func.func @transform_1(%arg0: i32) -> (i32, i32) {
    %c0_i32 = arith.constant 0 : i32
    %c0_i32_0 = arith.constant 0 : i32
    %c0_i32_1 = arith.constant 0 : i32
    return %c0_i32, %c0_i32_0 : i32, i32
  }
  func.func @transform_2(%arg0: i32) -> (i32, i32) {
    %c0_i32 = arith.constant 0 : i32
    %c0_i32_0 = arith.constant 0 : i32
    %c0_i32_1 = arith.constant 0 : i32
    return %c0_i32, %c0_i32_0 : i32, i32
  }
  func.func @transform_3(%arg0: i32) -> (i32, i32, i32) {
    %c0_i32 = arith.constant 0 : i32
    %c0_i32_0 = arith.constant 0 : i32
    %c0_i32_1 = arith.constant 0 : i32
    return %arg0, %c0_i32, %c0_i32_0 : i32, i32, i32
  }
  func.func @transform_4(%arg0: i32) -> (i32, i32, i32) {
    %c0_i32 = arith.constant 0 : i32
    %c0_i32_0 = arith.constant 0 : i32
    %c0_i32_1 = arith.constant 0 : i32
    return %arg0, %c0_i32, %c0_i32_0 : i32, i32, i32
  }
  func.func @transform_5(%arg0: i32) -> (i32, i32, i32) {
    %c0_i32 = arith.constant 0 : i32
    %c0_i32_0 = arith.constant 0 : i32
    %c0_i32_1 = arith.constant 0 : i32
    return %arg0, %c0_i32, %c0_i32_0 : i32, i32, i32
  }
  func.func @transform_6(%arg0: i32) -> (i32, i32) {
    %c0_i32 = arith.constant 0 : i32
    %c0_i32_0 = arith.constant 0 : i32
    %c0_i32_1 = arith.constant 0 : i32
    return %c0_i32, %c0_i32_0 : i32, i32
  }
  func.func @transform_7(%arg0: i32) -> (i32, i32) {
    %c0_i32 = arith.constant 0 : i32
    %c0_i32_0 = arith.constant 0 : i32
    %c0_i32_1 = arith.constant 0 : i32
    return %c0_i32, %c0_i32_0 : i32, i32
  }
  func.func @transform_8(%arg0: i32) -> (i32, i32) {
    %c0_i32 = arith.constant 0 : i32
    %c0_i32_0 = arith.constant 0 : i32
    %c0_i32_1 = arith.constant 0 : i32
    return %c0_i32, %c0_i32_0 : i32, i32
  }
  func.func @transform_9(%arg0: i32) -> (i32, i32) {
    %c0_i32 = arith.constant 0 : i32
    %c0_i32_0 = arith.constant 0 : i32
    %c0_i32_1 = arith.constant 0 : i32
    return %c0_i32, %c0_i32_0 : i32, i32
  }
  func.func @transform_10(%arg0: i32) -> (i32, i32) {
    %c0_i32 = arith.constant 0 : i32
    %c0_i32_0 = arith.constant 0 : i32
    %c0_i32_1 = arith.constant 0 : i32
    return %c0_i32, %c0_i32_0 : i32, i32
  }
  func.func @transform_11(%arg0: i32) -> (i32, i32) {
    %c0_i32 = arith.constant 0 : i32
    %c0_i32_0 = arith.constant 0 : i32
    %c0_i32_1 = arith.constant 0 : i32
    return %c0_i32, %c0_i32_0 : i32, i32
  }
  func.func @transform_12(%arg0: i32) -> (i32, i32) {
    %c0_i32 = arith.constant 0 : i32
    %c0_i32_0 = arith.constant 0 : i32
    %c0_i32_1 = arith.constant 0 : i32
    return %c0_i32, %c0_i32_0 : i32, i32
  }
  func.func @transform_13(%arg0: i32) -> (i32, i32, i32) {
    %c0_i32 = arith.constant 0 : i32
    %c0_i32_0 = arith.constant 0 : i32
    %c0_i32_1 = arith.constant 0 : i32
    return %arg0, %c0_i32, %c0_i32_0 : i32, i32, i32
  }
}

</mosaic_0001>

<llo_original>
// kernel: mab_forward.2
$region0: #{mab_forward.2}
  #allocation0 [shape = 'u32[]', space=smem, size = 0x4, offset = 0x4, fixed_abs, tag = 'smem constant byte address 0x4 - core index']
  #allocation1 [shape = 'u32[144,128]{1,0:T(1,128)}', space=vmem, size = 0x12000, scoped, tag = 'internal scratch']
  #allocation2 [shape = 'f32[16,8]{1,0:T(8,128)}', space=vmem, size = 0x2000, scoped, tag = 'scratch operand']
  %s0 = inlined_call_operand.vmem [shape: bf16[16,128], index: 0, kind: input, shape index: {}]
  %s1 = inlined_call_operand.vmem [shape: bf16[128,8], index: 1, kind: input, shape index: {}]
  %s2 = inlined_call_operand.vmem [shape: bf16[8,128], index: 2, kind: input, shape index: {}]
  %s3 = inlined_call_operand.vmem [shape: f32[1,128], index: 3, kind: input, shape index: {}]
  %s4 = inlined_call_operand.vmem [shape: bf16[8,128], index: 4, kind: input, shape index: {}]
  %s5 = inlined_call_operand.vmem [shape: f32[1,128], index: 5, kind: input, shape index: {}]
  %s6 = inlined_call_operand.vmem [shape: bf16[16,128], index: 6, kind: output, shape index: {0}]
  %s7 = inlined_call_operand.vmem [shape: bf16[16,128], index: 7, kind: output, shape index: {1}]
  %8 = xla_tuple %s6, %s7
  %s9 = sld [smem:[#allocation0]]
  $region50: #{mab_forward.2} parent=0
    _
  %s11 = ssub.s32 1, %s9
  %s12 = scalar_select 0, %s11, %s9
  // Predicated region
  $region2: #{mab_forward.2} parent=0 // pred_check
    _
  $region3: #{mab_forward.2} parent=0 // pred_check_branch
    %14 = sbr.rel (0) target = $region5
  $region4: #{mab_forward.2} parent=0 // pred_region
    _
  $region5: #{mab_forward.2} parent=0 // pred_fallthru
    _
  // Predicated region
  $region6: #{mab_forward.2} parent=0 // pred_check
    _
  $region7: #{mab_forward.2} parent=0 // pred_check_branch
    %16 = sbr.rel (0) target = $region9
  $region8: #{mab_forward.2} parent=0 // pred_region
    _
  $region9: #{mab_forward.2} parent=0 // pred_fallthru
    _
  // Predicated region
  $region10: #{mab_forward.2} parent=0 // pred_check
    _
  $region11: #{mab_forward.2} parent=0 // pred_check_branch
    %18 = sbr.rel (0) target = $region13
  $region12: #{mab_forward.2} parent=0 // pred_region
    _
  $region13: #{mab_forward.2} parent=0 // pred_fallthru
    _
  // Predicated region
  $region14: #{mab_forward.2} parent=0 // pred_check
    _
  $region15: #{mab_forward.2} parent=0 // pred_check_branch
    %20 = sbr.rel (0) target = $region17
  $region16: #{mab_forward.2} parent=0 // pred_region
    _
  $region17: #{mab_forward.2} parent=0 // pred_fallthru
    _
  // Predicated region
  $region18: #{mab_forward.2} parent=0 // pred_check
    _
  $region19: #{mab_forward.2} parent=0 // pred_check_branch
    %22 = sbr.rel (0) target = $region21
  $region20: #{mab_forward.2} parent=0 // pred_region
    _
  $region21: #{mab_forward.2} parent=0 // pred_fallthru
    _
  // Predicated region
  $region22: #{mab_forward.2} parent=0 // pred_check
    _
  $region23: #{mab_forward.2} parent=0 // pred_check_branch
    %24 = sbr.rel (0) target = $region25
  $region24: #{mab_forward.2} parent=0 // pred_region
    _
  $region25: #{mab_forward.2} parent=0 // pred_fallthru
    _
  %p26 = scmp.eq.s32.totalorder 0, 0
  // Predicated region
  $region26: #{mab_forward.2} parent=0 // pred_check
    %p27 = pneg %p26
  $region27: #{mab_forward.2} parent=0 // pred_check_branch
    %29 = sbr.rel (%p27) target = $region29
  $region28: #{mab_forward.2} parent=0 // pred_region
    %vm30 = vcmask 64512
    %31 = vst.msk [vmem:[#allocation2] sm:$0xff] %vm30, 0.0
    %32 = vst.msk [vmem:[#allocation2 + $0x8] sm:$0xff] %vm30, 0.0
  $region29: #{mab_forward.2} parent=0 // pred_fallthru
    _
  %v33 = vld [vmem:[#allocation2] sm:$0xff]
  %v34 = vld [vmem:[#allocation2 + $0x8] sm:$0xff]
  %v35 = vld [vmem:[%s0] sm:$0xf]
  %v36 = vld [vmem:[%s0 + $0x4] sm:$0xf]
  %v37 = vld [vmem:[%s1] sm:$0xf]
  %v38 = vld [vmem:[%s1 + $0x4] sm:$0xf]
  %v39 = vld [vmem:[%s1 + $0x8] sm:$0xf]
  %v40 = vld [vmem:[%s1 + $0xc] sm:$0xf]
  %v41 = vld [vmem:[%s1 + $0x10] sm:$0xf]
  %v42 = vld [vmem:[%s1 + $0x14] sm:$0xf]
  %v43 = vld [vmem:[%s1 + $0x18] sm:$0xf]
  %v44 = vld [vmem:[%s1 + $0x1c] sm:$0xf]
  %v45 = vld [vmem:[%s1 + $0x20] sm:$0xf]
  %v46 = vld [vmem:[%s1 + $0x24] sm:$0xf]
  %v47 = vld [vmem:[%s1 + $0x28] sm:$0xf]
  %v48 = vld [vmem:[%s1 + $0x2c] sm:$0xf]
  %v49 = vld [vmem:[%s1 + $0x30] sm:$0xf]
  %v50 = vld [vmem:[%s1 + $0x34] sm:$0xf]
  %v51 = vld [vmem:[%s1 + $0x38] sm:$0xf]
  %v52 = vld [vmem:[%s1 + $0x3c] sm:$0xf]
  %v55 = vunpack.c.l.b16 %v35
  %v56 = vunpack.c.l.b16 %v36
  %v57 = vpack.c.b16 %v56, %v55
  %v75 = vunpack.c.l.b16 %v37
  %v76 = vunpack.c.l.b16 %v38
  %v77 = vunpack.c.l.b16 %v39
  %v78 = vunpack.c.l.b16 %v40
  %v79 = vunpack.c.l.b16 %v41
  %v80 = vunpack.c.l.b16 %v42
  %v81 = vunpack.c.l.b16 %v43
  %v82 = vunpack.c.l.b16 %v44
  %v83 = vunpack.c.l.b16 %v45
  %v84 = vunpack.c.l.b16 %v46
  %v85 = vunpack.c.l.b16 %v47
  %v86 = vunpack.c.l.b16 %v48
  %v87 = vunpack.c.l.b16 %v49
  %v88 = vunpack.c.l.b16 %v50
  %v89 = vunpack.c.l.b16 %v51
  %v90 = vunpack.c.l.b16 %v52
  %v91 = vpack.c.b16 %v76, %v75
  %v92 = vpack.c.b16 %v78, %v77
  %v93 = vpack.c.b16 %v80, %v79
  %v94 = vpack.c.b16 %v82, %v81
  %v95 = vpack.c.b16 %v84, %v83
  %v96 = vpack.c.b16 %v86, %v85
  %v97 = vpack.c.b16 %v88, %v87
  %v98 = vpack.c.b16 %v90, %v89
  %107 = vmatprep.subr.bf16.mxu0 0
  %108 = vmatpush1.bf16.msra.mxu0 %v91
  %109 = vmatprep.subr.bf16.mxu0 0
  %110 = vmatpush1.bf16.msra.mxu0 %v92
  %111 = vmatprep.subr.bf16.mxu0 0
  %112 = vmatpush1.bf16.msra.mxu0 %v93
  %113 = vmatprep.subr.bf16.mxu0 0
  %114 = vmatpush1.bf16.msra.mxu0 %v94
  %115 = vmatprep.subr.bf16.mxu0 0
  %116 = vmatpush1.bf16.msra.mxu0 %v95
  %117 = vmatprep.subr.bf16.mxu0 0
  %118 = vmatpush1.bf16.msra.mxu0 %v96
  %119 = vmatprep.subr.bf16.mxu0 0
  %120 = vmatpush1.bf16.msra.mxu0 %v97
  %121 = vmatprep.subr.bf16.mxu0 0
  %122 = vmatpush1.bf16.msra.mxu0 %v98
  %123 = vmatprep.subr.bf16.mxu0 0
  %124 = vmatpush1.bf16.msra.mxu0 0
  %125 = vmatprep.subr.bf16.mxu0 0
  %126 = vmatpush1.bf16.msra.mxu0 0
  %127 = vmatprep.subr.bf16.mxu0 0
  %128 = vmatpush1.bf16.msra.mxu0 0
  %129 = vmatprep.subr.bf16.mxu0 0
  %130 = vmatpush1.bf16.msra.mxu0 0
  %131 = vmatprep.subr.bf16.mxu0 0
  %132 = vmatpush1.bf16.msra.mxu0 0
  %133 = vmatprep.subr.bf16.mxu0 0
  %134 = vmatpush1.bf16.msra.mxu0 0
  %135 = vmatprep.subr.bf16.mxu0 0
  %136 = vmatpush1.bf16.msra.mxu0 0
  %137 = vmatprep.subr.bf16.mxu0 0
  %138 = vmatpush1.bf16.msra.mxu0 0
  %139 = vmatprep.mubr.bf16.mxu0 0
  %140 = vmatmul.mubr.bf16.gmra.mrb[0].mxu0 %v57
  %v141 = vpop.f32.mrb[0].mxu0
  %v142 = vadd.f32 0.0, %v141
  %v143 = vpop.f32.mrb[0].mxu0
  %v144 = vpop.f32.mrb[0].mxu0
  %v145 = vadd.f32 0.0, %v144
  %v146 = vpop.f32.mrb[0].mxu0
  %147 = vdwg.mxu0
  %v148 = vadd.f32 %v33, %v142
  %v149 = vadd.f32 %v34, %v145
  %vm150 = vcmask 64512
  %151 = vst.msk [vmem:[#allocation2] sm:$0xff] %vm150, %v148
  %152 = vst.msk [vmem:[#allocation2 + $0x8] sm:$0xff] %vm150, %v149
  // Predicated region
  $region30: #{mab_forward.2} parent=0 // pred_check
    %p153 = pneg %p26
  $region31: #{mab_forward.2} parent=0 // pred_check_branch
    %155 = sbr.rel (%p153) target = $region33
  $region32: #{mab_forward.2} parent=0 // pred_region
    %v156 = vld [vmem:[#allocation2] sm:$0xff]
    %v157 = vld [vmem:[#allocation2 + $0x8] sm:$0xff]
    %v158 = vpack.c.bf16 %v157, %v156
    %v159 = vld [vmem:[%s2] sm:$0xf]
    %v160 = vld [vmem:[%s3] sm:$0x1]
    %v162 = vlaneseq
    %v163 = vshrl.u32 %v162, 7
    %v164 = vsub.s32 0, %v163
    %v165 = vrot.slane %v160, %v164
    %v168 = vsel %vm150, %v158, 0
    %vm170 = vcmask 1043456
    %v172 = vsel %vm170, %v159, 0
    %174 = vmatprep.subr.bf16.mxu0 0
    %175 = vmatpush1.bf16.msra.mxu0 %v172
    %176 = vmatprep.subr.bf16.mxu0 0
    %177 = vmatpush1.bf16.msra.mxu0 0
    %178 = vmatprep.subr.bf16.mxu0 0
    %179 = vmatpush1.bf16.msra.mxu0 0
    %180 = vmatprep.subr.bf16.mxu0 0
    %181 = vmatpush1.bf16.msra.mxu0 0
    %182 = vmatprep.subr.bf16.mxu0 0
    %183 = vmatpush1.bf16.msra.mxu0 0
    %184 = vmatprep.subr.bf16.mxu0 0
    %185 = vmatpush1.bf16.msra.mxu0 0
    %186 = vmatprep.subr.bf16.mxu0 0
    %187 = vmatpush1.bf16.msra.mxu0 0
    %188 = vmatprep.subr.bf16.mxu0 0
    %189 = vmatpush1.bf16.msra.mxu0 0
    %190 = vmatprep.subr.bf16.mxu0 0
    %191 = vmatpush1.bf16.msra.mxu0 0
    %192 = vmatprep.subr.bf16.mxu0 0
    %193 = vmatpush1.bf16.msra.mxu0 0
    %194 = vmatprep.subr.bf16.mxu0 0
    %195 = vmatpush1.bf16.msra.mxu0 0
    %196 = vmatprep.subr.bf16.mxu0 0
    %197 = vmatpush1.bf16.msra.mxu0 0
    %198 = vmatprep.subr.bf16.mxu0 0
    %199 = vmatpush1.bf16.msra.mxu0 0
    %200 = vmatprep.subr.bf16.mxu0 0
    %201 = vmatpush1.bf16.msra.mxu0 0
    %202 = vmatprep.subr.bf16.mxu0 0
    %203 = vmatpush1.bf16.msra.mxu0 0
    %204 = vmatprep.subr.bf16.mxu0 0
    %205 = vmatpush1.bf16.msra.mxu0 0
    %206 = vmatprep.mubr.bf16.mxu0 0
    %207 = vmatmul.mubr.bf16.gmra.mrb[0].mxu0 %v168
    %v208 = vpop.f32.mrb[0].mxu0
    %v209 = vadd.f32 %v165, %v208
    %v210 = vpop.f32.mrb[0].mxu0
    %v211 = vpop.f32.mrb[0].mxu0
    %v212 = vadd.f32 %v165, %v211
    %v213 = vpop.f32.mrb[0].mxu0
    %214 = vdwg.mxu0
    %v215 = vpack.c.bf16 %v212, %v209
    %v217 = vunpack.c.l.b16 %v215
    %v218 = vunpack.c.h.b16 %v215
    %v219 = vpack.c.b16 %v217, %v217
    %v220 = vpack.c.b16 %v218, %v218
    %223 = vst [vmem:[%s6] sm:$0xf] %v219
    %224 = vst [vmem:[%s6 + $0x4] sm:$0xf] %v220
    %v225 = vld [vmem:[%s4] sm:$0xf]
    %v226 = vld [vmem:[%s5] sm:$0x1]
    %v228 = vlaneseq
    %v229 = vshrl.u32 %v228, 7
    %v230 = vsub.s32 0, %v229
    %v231 = vrot.slane %v226, %v230
    %v234 = vsel %vm170, %v225, 0
    %236 = vmatprep.subr.bf16.mxu0 0
    %237 = vmatpush1.bf16.msra.mxu0 %v234
    %238 = vmatprep.subr.bf16.mxu0 0
    %239 = vmatpush1.bf16.msra.mxu0 0
    %240 = vmatprep.subr.bf16.mxu0 0
    %241 = vmatpush1.bf16.msra.mxu0 0
    %242 = vmatprep.subr.bf16.mxu0 0
    %243 = vmatpush1.bf16.msra.mxu0 0
    %244 = vmatprep.subr.bf16.mxu0 0
    %245 = vmatpush1.bf16.msra.mxu0 0
    %246 = vmatprep.subr.bf16.mxu0 0
    %247 = vmatpush1.bf16.msra.mxu0 0
    %248 = vmatprep.subr.bf16.mxu0 0
    %249 = vmatpush1.bf16.msra.mxu0 0
    %250 = vmatprep.subr.bf16.mxu0 0
    %251 = vmatpush1.bf16.msra.mxu0 0
    %252 = vmatprep.subr.bf16.mxu0 0
    %253 = vmatpush1.bf16.msra.mxu0 0
    %254 = vmatprep.subr.bf16.mxu0 0
    %255 = vmatpush1.bf16.msra.mxu0 0
    %256 = vmatprep.subr.bf16.mxu0 0
    %257 = vmatpush1.bf16.msra.mxu0 0
    %258 = vmatprep.subr.bf16.mxu0 0
    %259 = vmatpush1.bf16.msra.mxu0 0
    %260 = vmatprep.subr.bf16.mxu0 0
    %261 = vmatpush1.bf16.msra.mxu0 0
    %262 = vmatprep.subr.bf16.mxu0 0
    %263 = vmatpush1.bf16.msra.mxu0 0
    %264 = vmatprep.subr.bf16.mxu0 0
    %265 = vmatpush1.bf16.msra.mxu0 0
    %266 = vmatprep.subr.bf16.mxu0 0
    %267 = vmatpush1.bf16.msra.mxu0 0
    %268 = vmatprep.mubr.bf16.mxu0 0
    %269 = vmatmul.mubr.bf16.gmra.mrb[0].mxu0 %v168
    %v270 = vpop.f32.mrb[0].mxu0
    %v271 = vadd.f32 %v231, %v270
    %v272 = vpop.f32.mrb[0].mxu0
    %v273 = vpop.f32.mrb[0].mxu0
    %v274 = vadd.f32 %v231, %v273
    %v275 = vpop.f32.mrb[0].mxu0
    %276 = vdwg.mxu0
    %v277 = vpack.c.bf16 %v274, %v271
    %v279 = vunpack.c.l.b16 %v277
    %v280 = vunpack.c.h.b16 %v277
    %v281 = vpack.c.b16 %v279, %v279
    %v282 = vpack.c.b16 %v280, %v280
    %285 = vst [vmem:[%s7] sm:$0xf] %v281
    %286 = vst [vmem:[%s7 + $0x4] sm:$0xf] %v282
  $region33: #{mab_forward.2} parent=0 // pred_fallthru
    _
  // Predicated region
  $region34: #{mab_forward.2} parent=0 // pred_check
    _
  $region35: #{mab_forward.2} parent=0 // pred_check_branch
    %288 = sbr.rel (0) target = $region37
  $region36: #{mab_forward.2} parent=0 // pred_region
    _
  $region37: #{mab_forward.2} parent=0 // pred_fallthru
    _
  // Predicated region
  $region38: #{mab_forward.2} parent=0 // pred_check
    _
  $region39: #{mab_forward.2} parent=0 // pred_check_branch
    %290 = sbr.rel (0) target = $region41
  $region40: #{mab_forward.2} parent=0 // pred_region
    _
  $region41: #{mab_forward.2} parent=0 // pred_fallthru
    _
  // Predicated region
  $region42: #{mab_forward.2} parent=0 // pred_check
    _
  $region43: #{mab_forward.2} parent=0 // pred_check_branch
    %292 = sbr.rel (0) target = $region45
  $region44: #{mab_forward.2} parent=0 // pred_region
    _
  $region45: #{mab_forward.2} parent=0 // pred_fallthru
    _
  // Predicated region
  $region46: #{mab_forward.2} parent=0 // pred_check
    _
  $region47: #{mab_forward.2} parent=0 // pred_check_branch
    %294 = sbr.rel (0) target = $region49
  $region48: #{mab_forward.2} parent=0 // pred_region
    _
  $region49: #{mab_forward.2} parent=0 // pred_fallthru
    _

// kernel: mab_forward.3
$region0: #{mab_forward.3}
  #allocation0 [shape = 'u32[]', space=smem, size = 0x4, offset = 0x4, fixed_abs, tag = 'smem constant byte address 0x4 - core index']
  #allocation1 [shape = 'u32[144,128]{1,0:T(1,128)}', space=vmem, size = 0x12000, scoped, tag = 'internal scratch']
  %s0 = inlined_call_operand.vmem [shape: f32[2,4,8], index: 0, kind: input, shape index: {}]
  %s1 = inlined_call_operand.vmem [shape: bf16[8,128], index: 1, kind: input, shape index: {}]
  %s2 = inlined_call_operand.vmem [shape: f32[1,128], index: 2, kind: input, shape index: {}]
  %s3 = inlined_call_operand.vmem [shape: bf16[2,8,128], index: 3, kind: input, shape index: {}]
  %s4 = inlined_call_operand.vmem [shape: bf16[2,8,128], index: 4, kind: input, shape index: {}]
  %s5 = inlined_call_operand.vmem [shape: f32[2,1,8], index: 5, kind: input, shape index: {}]
  %s6 = inlined_call_operand.vmem [shape: f32[1,128], index: 6, kind: input, shape index: {}]
  %s7 = inlined_call_operand.vmem [shape: f32[1,128], index: 7, kind: input, shape index: {}]
  %s8 = inlined_call_operand.vmem [shape: bf16[128,128], index: 8, kind: input, shape index: {}]
  %s9 = inlined_call_operand.vmem [shape: f32[1,128], index: 9, kind: input, shape index: {}]
  %s10 = inlined_call_operand.vmem [shape: f32[1,128], index: 10, kind: input, shape index: {}]
  %s11 = inlined_call_operand.vmem [shape: f32[1,128], index: 11, kind: input, shape index: {}]
  %s12 = inlined_call_operand.vmem [shape: f32[1,128], index: 12, kind: input, shape index: {}]
  %s13 = inlined_call_operand.vmem [shape: f32[2,4,128], index: 13, kind: output, shape index: {}]
  %s14 = sld [smem:[#allocation0]]
  $region85: #{mab_forward.3} parent=0
    _
  %s16 = ssub.s32 1, %s14
  %s17 = scalar_select 0, %s16, %s14
  loop: start=0, step=1, limit=4
  $region2: #{mab_forward.3} parent=0 // loop_pre_header
    _
  $region3: #{mab_forward.3} parent=0 // loop_header
    %s19 = sphi 0, %s23
    %p20 = scmp.ge.s32.totalorder %s19, 4
    %s29 = sphi 0, %s31
    %s32 = sphi 0, %s29
    %s33 = sphi 0, %s32
    %s49 = sphi 0, %s33
    %s53 = sphi 0, %s53
    %s55 = sphi 0, %s53
    %s56 = sphi 0, %s55
    %s70 = sphi 0, %s56
    %s74 = sphi 0, %s74
    %s76 = sphi 0, %s74
    %s77 = sphi 0, %s76
    %s91 = sphi 0, %s77
    %s97 = sphi 0, %s99
    %s100 = sphi 0, %s97
    %s101 = sphi 0, %s100
    %s117 = sphi 0, %s101
    %s123 = sphi 0, %s125
    %s126 = sphi 0, %s123
    %s127 = sphi 0, %s126
    %s143 = sphi 0, %s127
    %s149 = sphi 0, %s151
    %s152 = sphi 0, %s149
    %s153 = sphi 0, %s152
    %s169 = sphi 0, %s153
    %s173 = sphi 0, %s173
    %s175 = sphi 0, %s173
    %s176 = sphi 0, %s175
    %s190 = sphi 0, %s176
    %s194 = sphi 0, %s194
    %s196 = sphi 0, %s194
    %s197 = sphi 0, %s196
    %s211 = sphi 0, %s197
    %s215 = sphi 0, %s215
    %s217 = sphi 0, %s215
    %s218 = sphi 0, %s217
    %s232 = sphi 0, %s218
    %s236 = sphi 0, %s236
    %s238 = sphi 0, %s236
    %s239 = sphi 0, %s238
    %s253 = sphi 0, %s239
    %s257 = sphi 0, %s257
    %s259 = sphi 0, %s257
    %s260 = sphi 0, %s259
    %s274 = sphi 0, %s260
    %s278 = sphi 0, %s278
    %s280 = sphi 0, %s278
    %s281 = sphi 0, %s280
    %s295 = sphi 0, %s281
    %s299 = sphi 0, %s299
    %s301 = sphi 0, %s299
    %s302 = sphi 0, %s301
    %s316 = sphi 0, %s302
    %s322 = sphi 0, %s324
    %s325 = sphi 0, %s322
    %s326 = sphi 0, %s325
    %s342 = sphi 0, %s326
  $region4: #{mab_forward.3} parent=0 // loop_header_branch
    %22 = sbr.rel (%p20) target = $region8
  $region5: #{mab_forward.3} parent=0 // loop_body
    %s24 = ssub.s32 %s19, 1
    %s25 = ssub.s32 %s19, 2
    %s26 = sadd.s32 %s19, 1
    %s27 = ssub.s32 %s19, %s26
    %p28 = scmp.eq.s32.totalorder %s27, 0
    %s30 = sadd.s32 %s29, 1
    %s31 = scalar_select %p28, %s29, %s30
    %p34 = pneg %p28
    %p35 = scmp.eq.s32.totalorder %s19, 1
    %p36 = por %p34, %p35
    %p37 = scmp.ne.s32.totalorder %s29, %s32
    %p38 = scmp.eq.s32.totalorder %s19, 0
    %p39 = por %p37, %p38
    %p40 = scmp.ne.s32.totalorder %s29, %s32
    %p41 = scmp.eq.s32.totalorder %s24, 1
    %p42 = por %p40, %p41
    %p43 = scmp.ne.s32.totalorder %s32, %s33
    %p44 = scmp.eq.s32.totalorder %s24, 0
    %p45 = por %p43, %p44
    %p46 = scmp.ne.s32.totalorder %s32, %s33
    %p47 = scmp.eq.s32.totalorder %s25, 1
    %p48 = por %p46, %p47
    %p50 = scmp.ne.s32.totalorder %s33, %s49
    %p51 = scmp.eq.s32.totalorder %s25, 0
    %p52 = por %p50, %p51
    %s54 = sadd.s32 %s53, 1
    %p57 = scmp.eq.s32.totalorder %s19, 1
    %p58 = scmp.ne.s32.totalorder %s53, %s55
    %p59 = scmp.eq.s32.totalorder %s19, 0
    %p60 = por %p58, %p59
    %p61 = scmp.ne.s32.totalorder %s53, %s55
    %p62 = scmp.eq.s32.totalorder %s24, 1
    %p63 = por %p61, %p62
    %p64 = scmp.ne.s32.totalorder %s55, %s56
    %p65 = scmp.eq.s32.totalorder %s24, 0
    %p66 = por %p64, %p65
    %p67 = scmp.ne.s32.totalorder %s55, %s56
    %p68 = scmp.eq.s32.totalorder %s25, 1
    %p69 = por %p67, %p68
    %p71 = scmp.ne.s32.totalorder %s56, %s70
    %p72 = scmp.eq.s32.totalorder %s25, 0
    %p73 = por %p71, %p72
    %s75 = sadd.s32 %s74, 1
    %p78 = scmp.eq.s32.totalorder %s19, 1
    %p79 = scmp.ne.s32.totalorder %s74, %s76
    %p80 = scmp.eq.s32.totalorder %s19, 0
    %p81 = por %p79, %p80
    %p82 = scmp.ne.s32.totalorder %s74, %s76
    %p83 = scmp.eq.s32.totalorder %s24, 1
    %p84 = por %p82, %p83
    %p85 = scmp.ne.s32.totalorder %s76, %s77
    %p86 = scmp.eq.s32.totalorder %s24, 0
    %p87 = por %p85, %p86
    %p88 = scmp.ne.s32.totalorder %s76, %s77
    %p89 = scmp.eq.s32.totalorder %s25, 1
    %p90 = por %p88, %p89
    %p92 = scmp.ne.s32.totalorder %s77, %s91
    %p93 = scmp.eq.s32.totalorder %s25, 0
    %p94 = por %p92, %p93
    %s95 = ssub.s32 %s19, %s26
    %p96 = scmp.eq.s32.totalorder %s95, 0
    %s98 = sadd.s32 %s97, 1
    %s99 = scalar_select %p96, %s97, %s98
    %p102 = pneg %p96
    %p103 = scmp.eq.s32.totalorder %s19, 1
    %p104 = por %p102, %p103
    %p105 = scmp.ne.s32.totalorder %s97, %s100
    %p106 = scmp.eq.s32.totalorder %s19, 0
    %p107 = por %p105, %p106
    %p108 = scmp.ne.s32.totalorder %s97, %s100
    %p109 = scmp.eq.s32.totalorder %s24, 1
    %p110 = por %p108, %p109
    %p111 = scmp.ne.s32.totalorder %s100, %s101
    %p112 = scmp.eq.s32.totalorder %s24, 0
    %p113 = por %p111, %p112
    %p114 = scmp.ne.s32.totalorder %s100, %s101
    %p115 = scmp.eq.s32.totalorder %s25, 1
    %p116 = por %p114, %p115
    %p118 = scmp.ne.s32.totalorder %s101, %s117
    %p119 = scmp.eq.s32.totalorder %s25, 0
    %p120 = por %p118, %p119
    %s121 = ssub.s32 %s19, %s26
    %p122 = scmp.eq.s32.totalorder %s121, 0
    %s124 = sadd.s32 %s123, 1
    %s125 = scalar_select %p122, %s123, %s124
    %p128 = pneg %p122
    %p129 = scmp.eq.s32.totalorder %s19, 1
    %p130 = por %p128, %p129
    %p131 = scmp.ne.s32.totalorder %s123, %s126
    %p132 = scmp.eq.s32.totalorder %s19, 0
    %p133 = por %p131, %p132
    %p134 = scmp.ne.s32.totalorder %s123, %s126
    %p135 = scmp.eq.s32.totalorder %s24, 1
    %p136 = por %p134, %p135
    %p137 = scmp.ne.s32.totalorder %s126, %s127
    %p138 = scmp.eq.s32.totalorder %s24, 0
    %p139 = por %p137, %p138
    %p140 = scmp.ne.s32.totalorder %s126, %s127
    %p141 = scmp.eq.s32.totalorder %s25, 1
    %p142 = por %p140, %p141
    %p144 = scmp.ne.s32.totalorder %s127, %s143
    %p145 = scmp.eq.s32.totalorder %s25, 0
    %p146 = por %p144, %p145
    %s147 = ssub.s32 %s19, %s26
    %p148 = scmp.eq.s32.totalorder %s147, 0
    %s150 = sadd.s32 %s149, 1
    %s151 = scalar_select %p148, %s149, %s150
    %p154 = pneg %p148
    %p155 = scmp.eq.s32.totalorder %s19, 1
    %p156 = por %p154, %p155
    %p157 = scmp.ne.s32.totalorder %s149, %s152
    %p158 = scmp.eq.s32.totalorder %s19, 0
    %p159 = por %p157, %p158
    %p160 = scmp.ne.s32.totalorder %s149, %s152
    %p161 = scmp.eq.s32.totalorder %s24, 1
    %p162 = por %p160, %p161
    %p163 = scmp.ne.s32.totalorder %s152, %s153
    %p164 = scmp.eq.s32.totalorder %s24, 0
    %p165 = por %p163, %p164
    %p166 = scmp.ne.s32.totalorder %s152, %s153
    %p167 = scmp.eq.s32.totalorder %s25, 1
    %p168 = por %p166, %p167
    %p170 = scmp.ne.s32.totalorder %s153, %s169
    %p171 = scmp.eq.s32.totalorder %s25, 0
    %p172 = por %p170, %p171
    %s174 = sadd.s32 %s173, 1
    %p177 = scmp.eq.s32.totalorder %s19, 1
    %p178 = scmp.ne.s32.totalorder %s173, %s175
    %p179 = scmp.eq.s32.totalorder %s19, 0
    %p180 = por %p178, %p179
    %p181 = scmp.ne.s32.totalorder %s173, %s175
    %p182 = scmp.eq.s32.totalorder %s24, 1
    %p183 = por %p181, %p182
    %p184 = scmp.ne.s32.totalorder %s175, %s176
    %p185 = scmp.eq.s32.totalorder %s24, 0
    %p186 = por %p184, %p185
    %p187 = scmp.ne.s32.totalorder %s175, %s176
    %p188 = scmp.eq.s32.totalorder %s25, 1
    %p189 = por %p187, %p188
    %p191 = scmp.ne.s32.totalorder %s176, %s190
    %p192 = scmp.eq.s32.totalorder %s25, 0
    %p193 = por %p191, %p192
    %s195 = sadd.s32 %s194, 1
    %p198 = scmp.eq.s32.totalorder %s19, 1
    %p199 = scmp.ne.s32.totalorder %s194, %s196
    %p200 = scmp.eq.s32.totalorder %s19, 0
    %p201 = por %p199, %p200
    %p202 = scmp.ne.s32.totalorder %s194, %s196
    %p203 = scmp.eq.s32.totalorder %s24, 1
    %p204 = por %p202, %p203
    %p205 = scmp.ne.s32.totalorder %s196, %s197
    %p206 = scmp.eq.s32.totalorder %s24, 0
    %p207 = por %p205, %p206
    %p208 = scmp.ne.s32.totalorder %s196, %s197
    %p209 = scmp.eq.s32.totalorder %s25, 1
    %p210 = por %p208, %p209
    %p212 = scmp.ne.s32.totalorder %s197, %s211
    %p213 = scmp.eq.s32.totalorder %s25, 0
    %p214 = por %p212, %p213
    %s216 = sadd.s32 %s215, 1
    %p219 = scmp.eq.s32.totalorder %s19, 1
    %p220 = scmp.ne.s32.totalorder %s215, %s217
    %p221 = scmp.eq.s32.totalorder %s19, 0
    %p222 = por %p220, %p221
    %p223 = scmp.ne.s32.totalorder %s215, %s217
    %p224 = scmp.eq.s32.totalorder %s24, 1
    %p225 = por %p223, %p224
    %p226 = scmp.ne.s32.totalorder %s217, %s218
    %p227 = scmp.eq.s32.totalorder %s24, 0
    %p228 = por %p226, %p227
    %p229 = scmp.ne.s32.totalorder %s217, %s218
    %p230 = scmp.eq.s32.totalorder %s25, 1
    %p231 = por %p229, %p230
    %p233 = scmp.ne.s32.totalorder %s218, %s232
    %p234 = scmp.eq.s32.totalorder %s25, 0
    %p235 = por %p233, %p234
    %s237 = sadd.s32 %s236, 1
    %p240 = scmp.eq.s32.totalorder %s19, 1
    %p241 = scmp.ne.s32.totalorder %s236, %s238
    %p242 = scmp.eq.s32.totalorder %s19, 0
    %p243 = por %p241, %p242
    %p244 = scmp.ne.s32.totalorder %s236, %s238
    %p245 = scmp.eq.s32.totalorder %s24, 1
    %p246 = por %p244, %p245
    %p247 = scmp.ne.s32.totalorder %s238, %s239
    %p248 = scmp.eq.s32.totalorder %s24, 0
    %p249 = por %p247, %p248
    %p250 = scmp.ne.s32.totalorder %s238, %s239
    %p251 = scmp.eq.s32.totalorder %s25, 1
    %p252 = por %p250, %p251
    %p254 = scmp.ne.s32.totalorder %s239, %s253
    %p255 = scmp.eq.s32.totalorder %s25, 0
    %p256 = por %p254, %p255
    %s258 = sadd.s32 %s257, 1
    %p261 = scmp.eq.s32.totalorder %s19, 1
    %p262 = scmp.ne.s32.totalorder %s257, %s259
    %p263 = scmp.eq.s32.totalorder %s19, 0
    %p264 = por %p262, %p263
    %p265 = scmp.ne.s32.totalorder %s257, %s259
    %p266 = scmp.eq.s32.totalorder %s24, 1
    %p267 = por %p265, %p266
    %p268 = scmp.ne.s32.totalorder %s259, %s260
    %p269 = scmp.eq.s32.totalorder %s24, 0
    %p270 = por %p268, %p269
    %p271 = scmp.ne.s32.totalorder %s259, %s260
    %p272 = scmp.eq.s32.totalorder %s25, 1
    %p273 = por %p271, %p272
    %p275 = scmp.ne.s32.totalorder %s260, %s274
    %p276 = scmp.eq.s32.totalorder %s25, 0
    %p277 = por %p275, %p276
    %s279 = sadd.s32 %s278, 1
    %p282 = scmp.eq.s32.totalorder %s19, 1
    %p283 = scmp.ne.s32.totalorder %s278, %s280
    %p284 = scmp.eq.s32.totalorder %s19, 0
    %p285 = por %p283, %p284
    %p286 = scmp.ne.s32.totalorder %s278, %s280
    %p287 = scmp.eq.s32.totalorder %s24, 1
    %p288 = por %p286, %p287
    %p289 = scmp.ne.s32.totalorder %s280, %s281
    %p290 = scmp.eq.s32.totalorder %s24, 0
    %p291 = por %p289, %p290
    %p292 = scmp.ne.s32.totalorder %s280, %s281
    %p293 = scmp.eq.s32.totalorder %s25, 1
    %p294 = por %p292, %p293
    %p296 = scmp.ne.s32.totalorder %s281, %s295
    %p297 = scmp.eq.s32.totalorder %s25, 0
    %p298 = por %p296, %p297
    %s300 = sadd.s32 %s299, 1
    %p303 = scmp.eq.s32.totalorder %s19, 1
    %p304 = scmp.ne.s32.totalorder %s299, %s301
    %p305 = scmp.eq.s32.totalorder %s19, 0
    %p306 = por %p304, %p305
    %p307 = scmp.ne.s32.totalorder %s299, %s301
    %p308 = scmp.eq.s32.totalorder %s24, 1
    %p309 = por %p307, %p308
    %p310 = scmp.ne.s32.totalorder %s301, %s302
    %p311 = scmp.eq.s32.totalorder %s24, 0
    %p312 = por %p310, %p311
    %p313 = scmp.ne.s32.totalorder %s301, %s302
    %p314 = scmp.eq.s32.totalorder %s25, 1
    %p315 = por %p313, %p314
    %p317 = scmp.ne.s32.totalorder %s302, %s316
    %p318 = scmp.eq.s32.totalorder %s25, 0
    %p319 = por %p317, %p318
    %s320 = ssub.s32 %s19, %s26
    %p321 = scmp.eq.s32.totalorder %s320, 0
    %s323 = sadd.s32 %s322, 1
    %s324 = scalar_select %p321, %s322, %s323
    %p327 = pneg %p321
    %p328 = scmp.eq.s32.totalorder %s19, 1
    %p329 = por %p327, %p328
    %p330 = scmp.ne.s32.totalorder %s322, %s325
    %p331 = scmp.eq.s32.totalorder %s19, 0
    %p332 = por %p330, %p331
    %p333 = scmp.ne.s32.totalorder %s322, %s325
    %p334 = scmp.eq.s32.totalorder %s24, 1
    %p335 = por %p333, %p334
    %p336 = scmp.ne.s32.totalorder %s325, %s326
    %p337 = scmp.eq.s32.totalorder %s24, 0
    %p338 = por %p336, %p337
    %p339 = scmp.ne.s32.totalorder %s325, %s326
    %p340 = scmp.eq.s32.totalorder %s25, 1
    %p341 = por %p339, %p340
    %p343 = scmp.ne.s32.totalorder %s326, %s342
    %p344 = scmp.eq.s32.totalorder %s25, 0
    %p345 = por %p343, %p344
    %p346 = scmp.le.s32.totalorder 1, %s19
    %p347 = scmp.lt.s32.totalorder %s19, 3
    %p348 = pnand %p346, %p347
    %p349 = pneg %p348
    // Predicated region
    $region9: #{mab_forward.3} parent=5 // pred_check
      _
    $region10: #{mab_forward.3} parent=5 // pred_check_branch
      %351 = sbr.rel (%p348) target = $region12
    $region11: #{mab_forward.3} parent=5 // pred_region
      %s352 = ssub.s32 %s19, 1
      // Predicated region
      $region13: #{mab_forward.3} parent=11 // pred_check
        %p353 = pneg %p66
      $region14: #{mab_forward.3} parent=11 // pred_check_branch
        %355 = sbr.rel (%p353) target = $region16
      $region15: #{mab_forward.3} parent=11 // pred_region
        _
      $region16: #{mab_forward.3} parent=11 // pred_fallthru
        _
      // Predicated region
      $region17: #{mab_forward.3} parent=11 // pred_check
        %p356 = pneg %p87
      $region18: #{mab_forward.3} parent=11 // pred_check_branch
        %358 = sbr.rel (%p356) target = $region20
      $region19: #{mab_forward.3} parent=11 // pred_region
        _
      $region20: #{mab_forward.3} parent=11 // pred_fallthru
        _
      // Predicated region
      $region21: #{mab_forward.3} parent=11 // pred_check
        %p359 = pneg %p186
      $region22: #{mab_forward.3} parent=11 // pred_check_branch
        %361 = sbr.rel (%p359) target = $region24
      $region23: #{mab_forward.3} parent=11 // pred_region
        _
      $region24: #{mab_forward.3} parent=11 // pred_fallthru
        _
      // Predicated region
      $region25: #{mab_forward.3} parent=11 // pred_check
        %p362 = pneg %p207
      $region26: #{mab_forward.3} parent=11 // pred_check_branch
        %364 = sbr.rel (%p362) target = $region28
      $region27: #{mab_forward.3} parent=11 // pred_region
        _
      $region28: #{mab_forward.3} parent=11 // pred_fallthru
        _
      // Predicated region
      $region29: #{mab_forward.3} parent=11 // pred_check
        %p365 = pneg %p228
      $region30: #{mab_forward.3} parent=11 // pred_check_branch
        %367 = sbr.rel (%p365) target = $region32
      $region31: #{mab_forward.3} parent=11 // pred_region
        _
      $region32: #{mab_forward.3} parent=11 // pred_fallthru
        _
      // Predicated region
      $region33: #{mab_forward.3} parent=11 // pred_check
        %p368 = pneg %p249
      $region34: #{mab_forward.3} parent=11 // pred_check_branch
        %370 = sbr.rel (%p368) target = $region36
      $region35: #{mab_forward.3} parent=11 // pred_region
        _
      $region36: #{mab_forward.3} parent=11 // pred_fallthru
        _
      // Predicated region
      $region37: #{mab_forward.3} parent=11 // pred_check
        %p371 = pneg %p270
      $region38: #{mab_forward.3} parent=11 // pred_check_branch
        %373 = sbr.rel (%p371) target = $region40
      $region39: #{mab_forward.3} parent=11 // pred_region
        _
      $region40: #{mab_forward.3} parent=11 // pred_fallthru
        _
      // Predicated region
      $region41: #{mab_forward.3} parent=11 // pred_check
        %p374 = pneg %p291
      $region42: #{mab_forward.3} parent=11 // pred_check_branch
        %376 = sbr.rel (%p374) target = $region44
      $region43: #{mab_forward.3} parent=11 // pred_region
        _
      $region44: #{mab_forward.3} parent=11 // pred_fallthru
        _
      // Predicated region
      $region45: #{mab_forward.3} parent=11 // pred_check
        %p377 = pneg %p312
      $region46: #{mab_forward.3} parent=11 // pred_check_branch
        %379 = sbr.rel (%p377) target = $region48
      $region47: #{mab_forward.3} parent=11 // pred_region
        _
      $region48: #{mab_forward.3} parent=11 // pred_fallthru
        _
    $region12: #{mab_forward.3} parent=5 // pred_fallthru
      _
    %p380 = scmp.lt.s32.totalorder %s19, 2
    // Predicated region
    $region49: #{mab_forward.3} parent=5 // pred_check
      %p381 = pneg %p380
    $region50: #{mab_forward.3} parent=5 // pred_check_branch
      %383 = sbr.rel (%p381) target = $region52
    $region51: #{mab_forward.3} parent=5 // pred_region
      // Predicated region
      $region53: #{mab_forward.3} parent=51 // pred_check
        %p384 = pneg %p39
      $region54: #{mab_forward.3} parent=51 // pred_check_branch
        %386 = sbr.rel (%p384) target = $region56
      $region55: #{mab_forward.3} parent=51 // pred_region
        %p387 = scmp.lt.s32.totalorder %s19, 1
        %s388 = scalar_select %p387, %s19, 1
        %s389 = smul.addr %s388, 4
        %s390 = scalar_lea.vmem %s0, %s389
      $region56: #{mab_forward.3} parent=51 // pred_fallthru
        _
      // Predicated region
      $region57: #{mab_forward.3} parent=51 // pred_check
        %p391 = pneg %p107
      $region58: #{mab_forward.3} parent=51 // pred_check_branch
        %393 = sbr.rel (%p391) target = $region60
      $region59: #{mab_forward.3} parent=51 // pred_region
        %p394 = scmp.lt.s32.totalorder %s19, 1
        %s395 = scalar_select %p394, %s19, 1
        %s396 = smul.addr %s395, 4
        %s397 = scalar_lea.vmem %s3, %s396
      $region60: #{mab_forward.3} parent=51 // pred_fallthru
        _
      // Predicated region
      $region61: #{mab_forward.3} parent=51 // pred_check
        %p398 = pneg %p133
      $region62: #{mab_forward.3} parent=51 // pred_check_branch
        %400 = sbr.rel (%p398) target = $region64
      $region63: #{mab_forward.3} parent=51 // pred_region
        %p401 = scmp.lt.s32.totalorder %s19, 1
        %s402 = scalar_select %p401, %s19, 1
        %s403 = smul.addr %s402, 4
        %s404 = scalar_lea.vmem %s4, %s403
      $region64: #{mab_forward.3} parent=51 // pred_fallthru
        _
      // Predicated region
      $region65: #{mab_forward.3} parent=51 // pred_check
        %p405 = pneg %p159
      $region66: #{mab_forward.3} parent=51 // pred_check_branch
        %407 = sbr.rel (%p405) target = $region68
      $region67: #{mab_forward.3} parent=51 // pred_region
        %p408 = scmp.lt.s32.totalorder %s19, 1
        %s409 = scalar_select %p408, %s19, 1
        %s410 = scalar_lea.vmem %s5, %s409
      $region68: #{mab_forward.3} parent=51 // pred_fallthru
        _
    $region52: #{mab_forward.3} parent=5 // pred_fallthru
      _
    %p411 = scmp.le.s32.totalorder 1, %s19
    %p412 = scmp.lt.s32.totalorder %s19, 3
    %p413 = pnand %p411, %p412
    %p414 = pneg %p413
    // Predicated region
    $region69: #{mab_forward.3} parent=5 // pred_check
      _
    $region70: #{mab_forward.3} parent=5 // pred_check_branch
      %416 = sbr.rel (%p413) target = $region72
    $region71: #{mab_forward.3} parent=5 // pred_region
      %s417 = ssub.s32 %s19, 1
      %p418 = scmp.lt.s32.totalorder %s24, 1
      %s419 = scalar_select %p418, %s24, 1
      %s420 = smul.addr %s419, 4
      %s421 = scalar_lea.vmem %s0, %s420
      %p422 = pneg %p45
      %p423 = pneg %p42
      %p424 = pneg %p66
      %p425 = pneg %p63
      %p426 = pneg %p87
      %p427 = pneg %p84
      %p428 = scmp.lt.s32.totalorder %s24, 1
      %s429 = scalar_select %p428, %s24, 1
      %s430 = smul.addr %s429, 4
      %s431 = scalar_lea.vmem %s3, %s430
      %p432 = pneg %p113
      %p433 = pneg %p110
      %p434 = scmp.lt.s32.totalorder %s24, 1
      %s435 = scalar_select %p434, %s24, 1
      %s436 = smul.addr %s435, 4
      %s437 = scalar_lea.vmem %s4, %s436
      %p438 = pneg %p139
      %p439 = pneg %p136
      %p440 = scmp.lt.s32.totalorder %s24, 1
      %s441 = scalar_select %p440, %s24, 1
      %s442 = scalar_lea.vmem %s5, %s441
      %p443 = pneg %p165
      %p444 = pneg %p162
      %p445 = pneg %p186
      %p446 = pneg %p183
      %p447 = pneg %p207
      %p448 = pneg %p204
      %p449 = pneg %p228
      %p450 = pneg %p225
      %p451 = pneg %p249
      %p452 = pneg %p246
      %p453 = pneg %p270
      %p454 = pneg %p267
      %p455 = pneg %p291
      %p456 = pneg %p288
      %p457 = pneg %p312
      %p458 = pneg %p309
      %p459 = pneg %p338
      %p460 = pneg %p335
      %p461 = scmp.lt.s32.totalorder %s24, 1
      %s462 = scalar_select %p461, %s24, 1
      %s463 = smul.addr %s462, 4
      %s464 = scalar_lea.vmem %s13, %s463
      %p465 = scmp.lt.s32.totalorder %s24, 1
      %s466 = scalar_select %p465, %s24, 1
      %s467 = smul.addr %s466, 4
      %s468 = scalar_lea.vmem %s0, %s467
      %p469 = scmp.lt.s32.totalorder %s24, 1
      %s470 = scalar_select %p469, %s24, 1
      %s471 = smul.addr %s470, 4
      %s472 = scalar_lea.vmem %s3, %s471
      %p473 = scmp.lt.s32.totalorder %s24, 1
      %s474 = scalar_select %p473, %s24, 1
      %s475 = smul.addr %s474, 4
      %s476 = scalar_lea.vmem %s4, %s475
      %p477 = scmp.lt.s32.totalorder %s24, 1
      %s478 = scalar_select %p477, %s24, 1
      %s479 = scalar_lea.vmem %s5, %s478
      %p480 = scmp.lt.s32.totalorder %s24, 1
      %s481 = scalar_select %p480, %s24, 1
      %s482 = smul.addr %s481, 4
      %s483 = scalar_lea.vmem %s13, %s482
      %v485 = vld [vmem:[%s1] sm:$0xf]
      %v486 = vld [vmem:[%s2] sm:$0x1]
      %v487 = vld [vmem:[%s8] sm:$0xf]
      %v488 = vld [vmem:[%s8 + $0x4] sm:$0xf]
      %v489 = vld [vmem:[%s8 + $0x8] sm:$0xf]
      %v490 = vld [vmem:[%s8 + $0xc] sm:$0xf]
      %v491 = vld [vmem:[%s8 + $0x10] sm:$0xf]
      %v492 = vld [vmem:[%s8 + $0x14] sm:$0xf]
      %v493 = vld [vmem:[%s8 + $0x18] sm:$0xf]
      %v494 = vld [vmem:[%s8 + $0x1c] sm:$0xf]
      %v495 = vld [vmem:[%s8 + $0x20] sm:$0xf]
      %v496 = vld [vmem:[%s8 + $0x24] sm:$0xf]
      %v497 = vld [vmem:[%s8 + $0x28] sm:$0xf]
      %v498 = vld [vmem:[%s8 + $0x2c] sm:$0xf]
      %v499 = vld [vmem:[%s8 + $0x30] sm:$0xf]
      %v500 = vld [vmem:[%s8 + $0x34] sm:$0xf]
      %v501 = vld [vmem:[%s8 + $0x38] sm:$0xf]
      %v502 = vld [vmem:[%s8 + $0x3c] sm:$0xf]
      %v503 = vld [vmem:[%s9] sm:$0x1]
      %v504 = vld [vmem:[%s6] sm:$0x1]
      %v505 = vld [vmem:[%s7] sm:$0x1]
      %v506 = vld [vmem:[%s10] sm:$0x1]
      %v507 = vld [vmem:[%s11] sm:$0x1]
      %v508 = vld [vmem:[%s12] sm:$0x1]
      %v509 = vld [vmem:[%s468] sm:$0xf]
      %v510 = vpack.c.bf16 %v509, %v509
      %v512 = vlaneseq
      %v513 = vshrl.u32 %v512, 7
      %v514 = vsub.s32 0, %v513
      %v515 = vrot.slane %v486, %v514
      %vm517 = vcmask 64512
      %v519 = vsel %vm517, %v510, 0
      %vm521 = vcmask 1043456
      %v523 = vsel %vm521, %v485, 0
      %525 = vmatprep.subr.bf16.mxu0 0
      %526 = vmatpush1.bf16.msra.mxu0 %v523
      %527 = vmatprep.subr.bf16.mxu0 0
      %528 = vmatpush1.bf16.msra.mxu0 0
      %529 = vmatprep.subr.bf16.mxu0 0
      %530 = vmatpush1.bf16.msra.mxu0 0
      %531 = vmatprep.subr.bf16.mxu0 0
      %532 = vmatpush1.bf16.msra.mxu0 0
      %533 = vmatprep.subr.bf16.mxu0 0
      %534 = vmatpush1.bf16.msra.mxu0 0
      %535 = vmatprep.subr.bf16.mxu0 0
      %536 = vmatpush1.bf16.msra.mxu0 0
      %537 = vmatprep.subr.bf16.mxu0 0
      %538 = vmatpush1.bf16.msra.mxu0 0
      %539 = vmatprep.subr.bf16.mxu0 0
      %540 = vmatpush1.bf16.msra.mxu0 0
      %541 = vmatprep.subr.bf16.mxu0 0
      %542 = vmatpush1.bf16.msra.mxu0 0
      %543 = vmatprep.subr.bf16.mxu0 0
      %544 = vmatpush1.bf16.msra.mxu0 0
      %545 = vmatprep.subr.bf16.mxu0 0
      %546 = vmatpush1.bf16.msra.mxu0 0
      %547 = vmatprep.subr.bf16.mxu0 0
      %548 = vmatpush1.bf16.msra.mxu0 0
      %549 = vmatprep.subr.bf16.mxu0 0
      %550 = vmatpush1.bf16.msra.mxu0 0
      %551 = vmatprep.subr.bf16.mxu0 0
      %552 = vmatpush1.bf16.msra.mxu0 0
      %553 = vmatprep.subr.bf16.mxu0 0
      %554 = vmatpush1.bf16.msra.mxu0 0
      %555 = vmatprep.subr.bf16.mxu0 0
      %556 = vmatpush1.bf16.msra.mxu0 0
      %557 = vmatprep.mubr.bf16.mxu0 0
      %558 = vmatmul.mubr.bf16.gmra.mrb[0].mxu0 %v519
      %v559 = vpop.f32.mrb[0].mxu0
      %v560 = vadd.f32 %v515, %v559
      %v561 = vpop.f32.mrb[0].mxu0
      %v562 = vpop.f32.mrb[0].mxu0
      %v563 = vpop.f32.mrb[0].mxu0
      %564 = vdwg.mxu0
      %v565 = vpack.c.bf16 %v560, %v560
      %v566 = vld [vmem:[%s472] sm:$0xf]
      %v567 = vld [vmem:[%s476] sm:$0xf]
      %v568 = vld [vmem:[%s479] sm:$0x1]
      %v570 = vlaneseq
      %v571 = vshrl.u32 %v570, 7
      %v572 = vsub.s32 0, %v571
      %v573 = vrot.slane %v568, %v572
      %vm575 = vcmask 261120
      %v577 = vsel %vm575, %v565, 0
      %v580 = vsel %vm575, %v566, 0
      %582 = vmatprep.subr.bf16.mxu0 0
      %583 = vmatpush1.bf16.xpose.msra.mxu0 %v580
      %584 = vmatprep.subr.bf16.mxu0 0
      %585 = vmatpush1.bf16.xpose.msra.mxu0 0
      %586 = vmatprep.subr.bf16.mxu0 0
      %587 = vmatpush1.bf16.xpose.msra.mxu0 0
      %588 = vmatprep.subr.bf16.mxu0 0
      %589 = vmatpush1.bf16.xpose.msra.mxu0 0
      %590 = vmatprep.subr.bf16.mxu0 0
      %591 = vmatpush1.bf16.xpose.msra.mxu0 0
      %592 = vmatprep.subr.bf16.mxu0 0
      %593 = vmatpush1.bf16.xpose.msra.mxu0 0
      %594 = vmatprep.subr.bf16.mxu0 0
      %595 = vmatpush1.bf16.xpose.msra.mxu0 0
      %596 = vmatprep.subr.bf16.mxu0 0
      %597 = vmatpush1.bf16.xpose.msra.mxu0 0
      %598 = vmatprep.subr.bf16.mxu0 0
      %599 = vmatpush1.bf16.xpose.msra.mxu0 0
      %600 = vmatprep.subr.bf16.mxu0 0
      %601 = vmatpush1.bf16.xpose.msra.mxu0 0
      %602 = vmatprep.subr.bf16.mxu0 0
      %603 = vmatpush1.bf16.xpose.msra.mxu0 0
      %604 = vmatprep.subr.bf16.mxu0 0
      %605 = vmatpush1.bf16.xpose.msra.mxu0 0
      %606 = vmatprep.subr.bf16.mxu0 0
      %607 = vmatpush1.bf16.xpose.msra.mxu0 0
      %608 = vmatprep.subr.bf16.mxu0 0
      %609 = vmatpush1.bf16.xpose.msra.mxu0 0
      %610 = vmatprep.subr.bf16.mxu0 0
      %611 = vmatpush1.bf16.xpose.msra.mxu0 0
      %612 = vmatprep.subr.bf16.mxu0 0
      %613 = vmatpush1.bf16.xpose.msra.mxu0 0
      %614 = vmatprep.mubr.bf16.mxu0 0
      %615 = vmatmul.mubr.bf16.gmra.mrb[0].mxu0 %v577
      %v616 = vpop.f32.mrb[0].mxu0
      %v617 = vadd.f32 %v573, %v616
      %v618 = vpop.f32.mrb[0].mxu0
      %v619 = vpop.f32.mrb[0].mxu0
      %v620 = vpop.f32.mrb[0].mxu0
      %621 = vdwg.mxu0
      %vm622 = vcmask 60416
      %v623 = vsel %vm622, %v617, -inf
      %624 = vmax.xlane.f32.xlu0 %v623
      %v625 = vpop.xlane.xlu0 %624
      %v626 = vsub.f32 %v617, %v625
      %v627 = vmul.f32 %v626, 1.442695
      %v628 = vpow.pop %v627
      %v629 = vsel %vm622, %v628, 0.0
      %630 = vadd.xlane.f32.xlu0 %v629
      %v631 = vpop.xlane.xlu0 %630
      %v632 = vrcp.pop %v631
      %v633 = vmul.f32 %v628, %v632
      %v634 = vpack.c.bf16 %v633, %v633
      %v636 = vsel %vm517, %v634, 0
      %v639 = vsel %vm521, %v567, 0
      %641 = vmatprep.subr.bf16.mxu0 0
      %642 = vmatpush1.bf16.msra.mxu0 %v639
      %643 = vmatprep.subr.bf16.mxu0 0
      %644 = vmatpush1.bf16.msra.mxu0 0
      %645 = vmatprep.subr.bf16.mxu0 0
      %646 = vmatpush1.bf16.msra.mxu0 0
      %647 = vmatprep.subr.bf16.mxu0 0
      %648 = vmatpush1.bf16.msra.mxu0 0
      %649 = vmatprep.subr.bf16.mxu0 0
      %650 = vmatpush1.bf16.msra.mxu0 0
      %651 = vmatprep.subr.bf16.mxu0 0
      %652 = vmatpush1.bf16.msra.mxu0 0
      %653 = vmatprep.subr.bf16.mxu0 0
      %654 = vmatpush1.bf16.msra.mxu0 0
      %655 = vmatprep.subr.bf16.mxu0 0
      %656 = vmatpush1.bf16.msra.mxu0 0
      %657 = vmatprep.subr.bf16.mxu0 0
      %658 = vmatpush1.bf16.msra.mxu0 0
      %659 = vmatprep.subr.bf16.mxu0 0
      %660 = vmatpush1.bf16.msra.mxu0 0
      %661 = vmatprep.subr.bf16.mxu0 0
      %662 = vmatpush1.bf16.msra.mxu0 0
      %663 = vmatprep.subr.bf16.mxu0 0
      %664 = vmatpush1.bf16.msra.mxu0 0
      %665 = vmatprep.subr.bf16.mxu0 0
      %666 = vmatpush1.bf16.msra.mxu0 0
      %667 = vmatprep.subr.bf16.mxu0 0
      %668 = vmatpush1.bf16.msra.mxu0 0
      %669 = vmatprep.subr.bf16.mxu0 0
      %670 = vmatpush1.bf16.msra.mxu0 0
      %671 = vmatprep.subr.bf16.mxu0 0
      %672 = vmatpush1.bf16.msra.mxu0 0
      %673 = vmatprep.mubr.bf16.mxu0 0
      %674 = vmatmul.mubr.bf16.gmra.mrb[0].mxu0 %v636
      %v675 = vpop.f32.mrb[0].mxu0
      %v676 = vadd.f32 0.0, %v675
      %v677 = vpop.f32.mrb[0].mxu0
      %v678 = vpop.f32.mrb[0].mxu0
      %v679 = vpop.f32.mrb[0].mxu0
      %680 = vdwg.mxu0
      %682 = vrot.lane.b32.xlu0 %v565, 96
      %v683 = vpop.permute.xlu0 %682
      %v685 = vunpack.c.l.b16 %v566
      %v686 = vpack.c.b16 %v685, %v685
      %687 = vrot.lane.b32.xlu0 %v686, 96
      %v688 = vpop.permute.xlu0 %687
      %v690 = vsel %vm575, %v683, 0
      %v693 = vsel %vm575, %v688, 0
      %695 = vmatprep.subr.bf16.mxu0 0
      %696 = vmatpush1.bf16.xpose.msra.mxu0 %v693
      %697 = vmatprep.subr.bf16.mxu0 0
      %698 = vmatpush1.bf16.xpose.msra.mxu0 0
      %699 = vmatprep.subr.bf16.mxu0 0
      %700 = vmatpush1.bf16.xpose.msra.mxu0 0
      %701 = vmatprep.subr.bf16.mxu0 0
      %702 = vmatpush1.bf16.xpose.msra.mxu0 0
      %703 = vmatprep.subr.bf16.mxu0 0
      %704 = vmatpush1.bf16.xpose.msra.mxu0 0
      %705 = vmatprep.subr.bf16.mxu0 0
      %706 = vmatpush1.bf16.xpose.msra.mxu0 0
      %707 = vmatprep.subr.bf16.mxu0 0
      %708 = vmatpush1.bf16.xpose.msra.mxu0 0
      %709 = vmatprep.subr.bf16.mxu0 0
      %710 = vmatpush1.bf16.xpose.msra.mxu0 0
      %711 = vmatprep.subr.bf16.mxu0 0
      %712 = vmatpush1.bf16.xpose.msra.mxu0 0
      %713 = vmatprep.subr.bf16.mxu0 0
      %714 = vmatpush1.bf16.xpose.msra.mxu0 0
      %715 = vmatprep.subr.bf16.mxu0 0
      %716 = vmatpush1.bf16.xpose.msra.mxu0 0
      %717 = vmatprep.subr.bf16.mxu0 0
      %718 = vmatpush1.bf16.xpose.msra.mxu0 0
      %719 = vmatprep.subr.bf16.mxu0 0
      %720 = vmatpush1.bf16.xpose.msra.mxu0 0
      %721 = vmatprep.subr.bf16.mxu0 0
      %722 = vmatpush1.bf16.xpose.msra.mxu0 0
      %723 = vmatprep.subr.bf16.mxu0 0
      %724 = vmatpush1.bf16.xpose.msra.mxu0 0
      %725 = vmatprep.subr.bf16.mxu0 0
      %726 = vmatpush1.bf16.xpose.msra.mxu0 0
      %727 = vmatprep.mubr.bf16.mxu0 0
      %728 = vmatmul.mubr.bf16.gmra.mrb[0].mxu0 %v690
      %v729 = vpop.f32.mrb[0].mxu0
      %v730 = vadd.f32 %v573, %v729
      %v731 = vpop.f32.mrb[0].mxu0
      %v732 = vpop.f32.mrb[0].mxu0
      %v733 = vpop.f32.mrb[0].mxu0
      %734 = vdwg.mxu0
      %v735 = vsel %vm622, %v730, -inf
      %736 = vmax.xlane.f32.xlu0 %v735
      %v737 = vpop.xlane.xlu0 %736
      %v738 = vsub.f32 %v730, %v737
      %v739 = vmul.f32 %v738, 1.442695
      %v740 = vpow.pop %v739
      %v741 = vsel %vm622, %v740, 0.0
      %742 = vadd.xlane.f32.xlu0 %v741
      %v743 = vpop.xlane.xlu0 %742
      %v744 = vrcp.pop %v743
      %v745 = vmul.f32 %v740, %v744
      %v746 = vpack.c.bf16 %v745, %v745
      %v748 = vunpack.c.l.b16 %v567
      %v749 = vpack.c.b16 %v748, %v748
      %750 = vrot.lane.b32.xlu0 %v749, 96
      %v751 = vpop.permute.xlu0 %750
      %v753 = vsel %vm517, %v746, 0
      %v756 = vsel %vm521, %v751, 0
      %758 = vmatprep.subr.bf16.mxu0 0
      %759 = vmatpush1.bf16.msra.mxu0 %v756
      %760 = vmatprep.subr.bf16.mxu0 0
      %761 = vmatpush1.bf16.msra.mxu0 0
      %762 = vmatprep.subr.bf16.mxu0 0
      %763 = vmatpush1.bf16.msra.mxu0 0
      %764 = vmatprep.subr.bf16.mxu0 0
      %765 = vmatpush1.bf16.msra.mxu0 0
      %766 = vmatprep.subr.bf16.mxu0 0
      %767 = vmatpush1.bf16.msra.mxu0 0
      %768 = vmatprep.subr.bf16.mxu0 0
      %769 = vmatpush1.bf16.msra.mxu0 0
      %770 = vmatprep.subr.bf16.mxu0 0
      %771 = vmatpush1.bf16.msra.mxu0 0
      %772 = vmatprep.subr.bf16.mxu0 0
      %773 = vmatpush1.bf16.msra.mxu0 0
      %774 = vmatprep.subr.bf16.mxu0 0
      %775 = vmatpush1.bf16.msra.mxu0 0
      %776 = vmatprep.subr.bf16.mxu0 0
      %777 = vmatpush1.bf16.msra.mxu0 0
      %778 = vmatprep.subr.bf16.mxu0 0
      %779 = vmatpush1.bf16.msra.mxu0 0
      %780 = vmatprep.subr.bf16.mxu0 0
      %781 = vmatpush1.bf16.msra.mxu0 0
      %782 = vmatprep.subr.bf16.mxu0 0
      %783 = vmatpush1.bf16.msra.mxu0 0
      %784 = vmatprep.subr.bf16.mxu0 0
      %785 = vmatpush1.bf16.msra.mxu0 0
      %786 = vmatprep.subr.bf16.mxu0 0
      %787 = vmatpush1.bf16.msra.mxu0 0
      %788 = vmatprep.subr.bf16.mxu0 0
      %789 = vmatpush1.bf16.msra.mxu0 0
      %790 = vmatprep.mubr.bf16.mxu0 0
      %791 = vmatmul.mubr.bf16.gmra.mrb[0].mxu0 %v753
      %v792 = vpop.f32.mrb[0].mxu0
      %v793 = vadd.f32 0.0, %v792
      %v794 = vpop.f32.mrb[0].mxu0
      %v795 = vpop.f32.mrb[0].mxu0
      %v796 = vpop.f32.mrb[0].mxu0
      %797 = vdwg.mxu0
      %798 = vrot.lane.b32.xlu0 %v565, 64
      %v799 = vpop.permute.xlu0 %798
      %800 = vrot.lane.b32.xlu0 %v686, 64
      %v801 = vpop.permute.xlu0 %800
      %v803 = vsel %vm575, %v799, 0
      %v806 = vsel %vm575, %v801, 0
      %808 = vmatprep.subr.bf16.mxu0 0
      %809 = vmatpush1.bf16.xpose.msra.mxu0 %v806
      %810 = vmatprep.subr.bf16.mxu0 0
      %811 = vmatpush1.bf16.xpose.msra.mxu0 0
      %812 = vmatprep.subr.bf16.mxu0 0
      %813 = vmatpush1.bf16.xpose.msra.mxu0 0
      %814 = vmatprep.subr.bf16.mxu0 0
      %815 = vmatpush1.bf16.xpose.msra.mxu0 0
      %816 = vmatprep.subr.bf16.mxu0 0
      %817 = vmatpush1.bf16.xpose.msra.mxu0 0
      %818 = vmatprep.subr.bf16.mxu0 0
      %819 = vmatpush1.bf16.xpose.msra.mxu0 0
      %820 = vmatprep.subr.bf16.mxu0 0
      %821 = vmatpush1.bf16.xpose.msra.mxu0 0
      %822 = vmatprep.subr.bf16.mxu0 0
      %823 = vmatpush1.bf16.xpose.msra.mxu0 0
      %824 = vmatprep.subr.bf16.mxu0 0
      %825 = vmatpush1.bf16.xpose.msra.mxu0 0
      %826 = vmatprep.subr.bf16.mxu0 0
      %827 = vmatpush1.bf16.xpose.msra.mxu0 0
      %828 = vmatprep.subr.bf16.mxu0 0
      %829 = vmatpush1.bf16.xpose.msra.mxu0 0
      %830 = vmatprep.subr.bf16.mxu0 0
      %831 = vmatpush1.bf16.xpose.msra.mxu0 0
      %832 = vmatprep.subr.bf16.mxu0 0
      %833 = vmatpush1.bf16.xpose.msra.mxu0 0
      %834 = vmatprep.subr.bf16.mxu0 0
      %835 = vmatpush1.bf16.xpose.msra.mxu0 0
      %836 = vmatprep.subr.bf16.mxu0 0
      %837 = vmatpush1.bf16.xpose.msra.mxu0 0
      %838 = vmatprep.subr.bf16.mxu0 0
      %839 = vmatpush1.bf16.xpose.msra.mxu0 0
      %840 = vmatprep.mubr.bf16.mxu0 0
      %841 = vmatmul.mubr.bf16.gmra.mrb[0].mxu0 %v803
      %v842 = vpop.f32.mrb[0].mxu0
      %v843 = vadd.f32 %v573, %v842
      %v844 = vpop.f32.mrb[0].mxu0
      %v845 = vpop.f32.mrb[0].mxu0
      %v846 = vpop.f32.mrb[0].mxu0
      %847 = vdwg.mxu0
      %v848 = vsel %vm622, %v843, -inf
      %849 = vmax.xlane.f32.xlu0 %v848
      %v850 = vpop.xlane.xlu0 %849
      %v851 = vsub.f32 %v843, %v850
      %v852 = vmul.f32 %v851, 1.442695
      %v853 = vpow.pop %v852
      %v854 = vsel %vm622, %v853, 0.0
      %855 = vadd.xlane.f32.xlu0 %v854
      %v856 = vpop.xlane.xlu0 %855
      %v857 = vrcp.pop %v856
      %v858 = vmul.f32 %v853, %v857
      %v859 = vpack.c.bf16 %v858, %v858
      %860 = vrot.lane.b32.xlu0 %v749, 64
      %v861 = vpop.permute.xlu0 %860
      %v863 = vsel %vm517, %v859, 0
      %v866 = vsel %vm521, %v861, 0
      %868 = vmatprep.subr.bf16.mxu0 0
      %869 = vmatpush1.bf16.msra.mxu0 %v866
      %870 = vmatprep.subr.bf16.mxu0 0
      %871 = vmatpush1.bf16.msra.mxu0 0
      %872 = vmatprep.subr.bf16.mxu0 0
      %873 = vmatpush1.bf16.msra.mxu0 0
      %874 = vmatprep.subr.bf16.mxu0 0
      %875 = vmatpush1.bf16.msra.mxu0 0
      %876 = vmatprep.subr.bf16.mxu0 0
      %877 = vmatpush1.bf16.msra.mxu0 0
      %878 = vmatprep.subr.bf16.mxu0 0
      %879 = vmatpush1.bf16.msra.mxu0 0
      %880 = vmatprep.subr.bf16.mxu0 0
      %881 = vmatpush1.bf16.msra.mxu0 0
      %882 = vmatprep.subr.bf16.mxu0 0
      %883 = vmatpush1.bf16.msra.mxu0 0
      %884 = vmatprep.subr.bf16.mxu0 0
      %885 = vmatpush1.bf16.msra.mxu0 0
      %886 = vmatprep.subr.bf16.mxu0 0
      %887 = vmatpush1.bf16.msra.mxu0 0
      %888 = vmatprep.subr.bf16.mxu0 0
      %889 = vmatpush1.bf16.msra.mxu0 0
      %890 = vmatprep.subr.bf16.mxu0 0
      %891 = vmatpush1.bf16.msra.mxu0 0
      %892 = vmatprep.subr.bf16.mxu0 0
      %893 = vmatpush1.bf16.msra.mxu0 0
      %894 = vmatprep.subr.bf16.mxu0 0
      %895 = vmatpush1.bf16.msra.mxu0 0
      %896 = vmatprep.subr.bf16.mxu0 0
      %897 = vmatpush1.bf16.msra.mxu0 0
      %898 = vmatprep.subr.bf16.mxu0 0
      %899 = vmatpush1.bf16.msra.mxu0 0
      %900 = vmatprep.mubr.bf16.mxu0 0
      %901 = vmatmul.mubr.bf16.gmra.mrb[0].mxu0 %v863
      %v902 = vpop.f32.mrb[0].mxu0
      %v903 = vadd.f32 0.0, %v902
      %v904 = vpop.f32.mrb[0].mxu0
      %v905 = vpop.f32.mrb[0].mxu0
      %v906 = vpop.f32.mrb[0].mxu0
      %907 = vdwg.mxu0
      %908 = vrot.lane.b32.xlu0 %v565, 32
      %v909 = vpop.permute.xlu0 %908
      %910 = vrot.lane.b32.xlu0 %v686, 32
      %v911 = vpop.permute.xlu0 %910
      %v913 = vsel %vm575, %v909, 0
      %v916 = vsel %vm575, %v911, 0
      %918 = vmatprep.subr.bf16.mxu0 0
      %919 = vmatpush1.bf16.xpose.msra.mxu0 %v916
      %920 = vmatprep.subr.bf16.mxu0 0
      %921 = vmatpush1.bf16.xpose.msra.mxu0 0
      %922 = vmatprep.subr.bf16.mxu0 0
      %923 = vmatpush1.bf16.xpose.msra.mxu0 0
      %924 = vmatprep.subr.bf16.mxu0 0
      %925 = vmatpush1.bf16.xpose.msra.mxu0 0
      %926 = vmatprep.subr.bf16.mxu0 0
      %927 = vmatpush1.bf16.xpose.msra.mxu0 0
      %928 = vmatprep.subr.bf16.mxu0 0
      %929 = vmatpush1.bf16.xpose.msra.mxu0 0
      %930 = vmatprep.subr.bf16.mxu0 0
      %931 = vmatpush1.bf16.xpose.msra.mxu0 0
      %932 = vmatprep.subr.bf16.mxu0 0
      %933 = vmatpush1.bf16.xpose.msra.mxu0 0
      %934 = vmatprep.subr.bf16.mxu0 0
      %935 = vmatpush1.bf16.xpose.msra.mxu0 0
      %936 = vmatprep.subr.bf16.mxu0 0
      %937 = vmatpush1.bf16.xpose.msra.mxu0 0
      %938 = vmatprep.subr.bf16.mxu0 0
      %939 = vmatpush1.bf16.xpose.msra.mxu0 0
      %940 = vmatprep.subr.bf16.mxu0 0
      %941 = vmatpush1.bf16.xpose.msra.mxu0 0
      %942 = vmatprep.subr.bf16.mxu0 0
      %943 = vmatpush1.bf16.xpose.msra.mxu0 0
      %944 = vmatprep.subr.bf16.mxu0 0
      %945 = vmatpush1.bf16.xpose.msra.mxu0 0
      %946 = vmatprep.subr.bf16.mxu0 0
      %947 = vmatpush1.bf16.xpose.msra.mxu0 0
      %948 = vmatprep.subr.bf16.mxu0 0
      %949 = vmatpush1.bf16.xpose.msra.mxu0 0
      %950 = vmatprep.mubr.bf16.mxu0 0
      %951 = vmatmul.mubr.bf16.gmra.mrb[0].mxu0 %v913
      %v952 = vpop.f32.mrb[0].mxu0
      %v953 = vadd.f32 %v573, %v952
      %v954 = vpop.f32.mrb[0].mxu0
      %v955 = vpop.f32.mrb[0].mxu0
      %v956 = vpop.f32.mrb[0].mxu0
      %957 = vdwg.mxu0
      %v958 = vsel %vm622, %v953, -inf
      %959 = vmax.xlane.f32.xlu0 %v958
      %v960 = vpop.xlane.xlu0 %959
      %v961 = vsub.f32 %v953, %v960
      %v962 = vmul.f32 %v961, 1.442695
      %v963 = vpow.pop %v962
      %v964 = vsel %vm622, %v963, 0.0
      %965 = vadd.xlane.f32.xlu0 %v964
      %v966 = vpop.xlane.xlu0 %965
      %v967 = vrcp.pop %v966
      %v968 = vmul.f32 %v963, %v967
      %v969 = vpack.c.bf16 %v968, %v968
      %970 = vrot.lane.b32.xlu0 %v749, 32
      %v971 = vpop.permute.xlu0 %970
      %v973 = vsel %vm517, %v969, 0
      %v976 = vsel %vm521, %v971, 0
      %978 = vmatprep.subr.bf16.mxu0 0
      %979 = vmatpush1.bf16.msra.mxu0 %v976
      %980 = vmatprep.subr.bf16.mxu0 0
      %981 = vmatpush1.bf16.msra.mxu0 0
      %982 = vmatprep.subr.bf16.mxu0 0
      %983 = vmatpush1.bf16.msra.mxu0 0
      %984 = vmatprep.subr.bf16.mxu0 0
      %985 = vmatpush1.bf16.msra.mxu0 0
      %986 = vmatprep.subr.bf16.mxu0 0
      %987 = vmatpush1.bf16.msra.mxu0 0
      %988 = vmatprep.subr.bf16.mxu0 0
      %989 = vmatpush1.bf16.msra.mxu0 0
      %990 = vmatprep.subr.bf16.mxu0 0
      %991 = vmatpush1.bf16.msra.mxu0 0
      %992 = vmatprep.subr.bf16.mxu0 0
      %993 = vmatpush1.bf16.msra.mxu0 0
      %994 = vmatprep.subr.bf16.mxu0 0
      %995 = vmatpush1.bf16.msra.mxu0 0
      %996 = vmatprep.subr.bf16.mxu0 0
      %997 = vmatpush1.bf16.msra.mxu0 0
      %998 = vmatprep.subr.bf16.mxu0 0
      %999 = vmatpush1.bf16.msra.mxu0 0
      %1000 = vmatprep.subr.bf16.mxu0 0
      %1001 = vmatpush1.bf16.msra.mxu0 0
      %1002 = vmatprep.subr.bf16.mxu0 0
      %1003 = vmatpush1.bf16.msra.mxu0 0
      %1004 = vmatprep.subr.bf16.mxu0 0
      %1005 = vmatpush1.bf16.msra.mxu0 0
      %1006 = vmatprep.subr.bf16.mxu0 0
      %1007 = vmatpush1.bf16.msra.mxu0 0
      %1008 = vmatprep.subr.bf16.mxu0 0
      %1009 = vmatpush1.bf16.msra.mxu0 0
      %1010 = vmatprep.mubr.bf16.mxu0 0
      %1011 = vmatmul.mubr.bf16.gmra.mrb[0].mxu0 %v973
      %v1012 = vpop.f32.mrb[0].mxu0
      %v1013 = vadd.f32 0.0, %v1012
      %v1014 = vpop.f32.mrb[0].mxu0
      %v1015 = vpop.f32.mrb[0].mxu0
      %v1016 = vpop.f32.mrb[0].mxu0
      %1017 = vdwg.mxu0
      %1019 = vrot.lane.b32.xlu0 %v793, 32
      %v1020 = vpop.permute.xlu0 %1019
      %1023 = vrot.lane.b32.xlu0 %v903, 64
      %v1024 = vpop.permute.xlu0 %1023
      %1027 = vrot.lane.b32.xlu0 %v1013, 96
      %v1028 = vpop.permute.xlu0 %1027
      %v1030 = vsel %vm575, %v676, %v1020
      %vm1031 = vcmask 523264
      %v1032 = vsel %vm1031, %v1030, %v1024
      %vm1033 = vcmask 785408
      %v1034 = vsel %vm1033, %v1032, %v1028
      %v1035 = vadd.f32 %v560, %v1034
      %v1036 = vsel %vm521, %v1035, 0.0
      %1037 = vadd.xlane.f32.xlu0 %v1036
      %v1038 = vpop.xlane.xlu0 %1037
      %v1039 = vmul.f32 %v1038, 0.03125
      %v1040 = vsub.f32 %v1035, %v1039
      %v1042 = vlaneseq
      %v1043 = vshrl.u32 %v1042, 7
      %v1044 = vsub.s32 0, %v1043
      %v1045 = vrot.slane %v508, %v1044
      %v1047 = vmul.f32 %v1040, %v1045
      %v1048 = vmul.f32 %v1047, %v1047
      %v1049 = vsel %vm521, %v1048, 0.0
      %1050 = vadd.xlane.f32.xlu0 %v1049
      %v1051 = vpop.xlane.xlu0 %1050
      %v1052 = vmul.f32 %v1051, 0.03125
      %v1053 = vadd.f32 %v1052, 1e-05
      %v1054 = vrsqrt.pop %v1053
      %v1055 = vmul.f32 %v1047, %v1054
      %v1057 = vlaneseq
      %v1058 = vshrl.u32 %v1057, 7
      %v1059 = vsub.s32 0, %v1058
      %v1060 = vrot.slane %v504, %v1059
      %v1062 = vmul.f32 %v1055, %v1060
      %v1064 = vlaneseq
      %v1065 = vshrl.u32 %v1064, 7
      %v1066 = vsub.s32 0, %v1065
      %v1067 = vrot.slane %v505, %v1066
      %v1069 = vadd.f32 %v1062, %v1067
      %v1070 = vpack.c.bf16 %v1069, %v1069
      %v1072 = vlaneseq
      %v1073 = vshrl.u32 %v1072, 7
      %v1074 = vsub.s32 0, %v1073
      %v1075 = vrot.slane %v503, %v1074
      %v1093 = vunpack.c.l.b16 %v487
      %v1094 = vunpack.c.l.b16 %v488
      %v1095 = vunpack.c.l.b16 %v489
      %v1096 = vunpack.c.l.b16 %v490
      %v1097 = vunpack.c.l.b16 %v491
      %v1098 = vunpack.c.l.b16 %v492
      %v1099 = vunpack.c.l.b16 %v493
      %v1100 = vunpack.c.l.b16 %v494
      %v1101 = vunpack.c.l.b16 %v495
      %v1102 = vunpack.c.l.b16 %v496
      %v1103 = vunpack.c.l.b16 %v497
      %v1104 = vunpack.c.l.b16 %v498
      %v1105 = vunpack.c.l.b16 %v499
      %v1106 = vunpack.c.l.b16 %v500
      %v1107 = vunpack.c.l.b16 %v501
      %v1108 = vunpack.c.l.b16 %v502
      %v1109 = vpack.c.b16 %v1094, %v1093
      %v1110 = vpack.c.b16 %v1096, %v1095
      %v1111 = vpack.c.b16 %v1098, %v1097
      %v1112 = vpack.c.b16 %v1100, %v1099
      %v1113 = vpack.c.b16 %v1102, %v1101
      %v1114 = vpack.c.b16 %v1104, %v1103
      %v1115 = vpack.c.b16 %v1106, %v1105
      %v1116 = vpack.c.b16 %v1108, %v1107
      %1125 = vmatprep.subr.bf16.mxu0 0
      %1126 = vmatpush1.bf16.msra.mxu0 %v1109
      %1127 = vmatprep.subr.bf16.mxu0 0
      %1128 = vmatpush1.bf16.msra.mxu0 %v1110
      %1129 = vmatprep.subr.bf16.mxu0 0
      %1130 = vmatpush1.bf16.msra.mxu0 %v1111
      %1131 = vmatprep.subr.bf16.mxu0 0
      %1132 = vmatpush1.bf16.msra.mxu0 %v1112
      %1133 = vmatprep.subr.bf16.mxu0 0
      %1134 = vmatpush1.bf16.msra.mxu0 %v1113
      %1135 = vmatprep.subr.bf16.mxu0 0
      %1136 = vmatpush1.bf16.msra.mxu0 %v1114
      %1137 = vmatprep.subr.bf16.mxu0 0
      %1138 = vmatpush1.bf16.msra.mxu0 %v1115
      %1139 = vmatprep.subr.bf16.mxu0 0
      %1140 = vmatpush1.bf16.msra.mxu0 %v1116
      %1141 = vmatprep.subr.bf16.mxu0 0
      %1142 = vmatpush1.bf16.msra.mxu0 0
      %1143 = vmatprep.subr.bf16.mxu0 0
      %1144 = vmatpush1.bf16.msra.mxu0 0
      %1145 = vmatprep.subr.bf16.mxu0 0
      %1146 = vmatpush1.bf16.msra.mxu0 0
      %1147 = vmatprep.subr.bf16.mxu0 0
      %1148 = vmatpush1.bf16.msra.mxu0 0
      %1149 = vmatprep.subr.bf16.mxu0 0
      %1150 = vmatpush1.bf16.msra.mxu0 0
      %1151 = vmatprep.subr.bf16.mxu0 0
      %1152 = vmatpush1.bf16.msra.mxu0 0
      %1153 = vmatprep.subr.bf16.mxu0 0
      %1154 = vmatpush1.bf16.msra.mxu0 0
      %1155 = vmatprep.subr.bf16.mxu0 0
      %1156 = vmatpush1.bf16.msra.mxu0 0
      %1157 = vmatprep.mubr.bf16.mxu0 0
      %1158 = vmatmul.mubr.bf16.gmra.mrb[0].mxu0 %v1070
      %v1159 = vpop.f32.mrb[0].mxu0
      %v1160 = vadd.f32 %v1075, %v1159
      %v1161 = vpop.f32.mrb[0].mxu0
      %v1162 = vpop.f32.mrb[0].mxu0
      %v1163 = vpop.f32.mrb[0].mxu0
      %1164 = vdwg.mxu0
      %v1165 = vmax.f32 %v1160, 0.0
      %v1166 = vadd.f32 %v1069, %v1165
      %v1167 = vsel %vm521, %v1166, 0.0
      %1168 = vadd.xlane.f32.xlu0 %v1167
      %v1169 = vpop.xlane.xlu0 %1168
      %v1170 = vmul.f32 %v1169, 0.03125
      %v1171 = vsub.f32 %v1166, %v1170
      %v1172 = vmul.f32 %v1171, %v1045
      %v1173 = vmul.f32 %v1172, %v1172
      %v1174 = vsel %vm521, %v1173, 0.0
      %1175 = vadd.xlane.f32.xlu0 %v1174
      %v1176 = vpop.xlane.xlu0 %1175
      %v1177 = vmul.f32 %v1176, 0.03125
      %v1178 = vadd.f32 %v1177, 1e-05
      %v1179 = vrsqrt.pop %v1178
      %v1180 = vmul.f32 %v1172, %v1179
      %v1182 = vlaneseq
      %v1183 = vshrl.u32 %v1182, 7
      %v1184 = vsub.s32 0, %v1183
      %v1185 = vrot.slane %v506, %v1184
      %v1187 = vmul.f32 %v1180, %v1185
      %v1189 = vlaneseq
      %v1190 = vshrl.u32 %v1189, 7
      %v1191 = vsub.s32 0, %v1190
      %v1192 = vrot.slane %v507, %v1191
      %v1194 = vadd.f32 %v1187, %v1192
      %1195 = vst [vmem:[%s483] sm:$0xf] %v1194
      %p1196 = scmp.lt.s32.totalorder %s24, 1
      %s1197 = scalar_select %p1196, %s24, 1
      %s1198 = smul.addr %s1197, 4
      %s1199 = scalar_lea.vmem %s13, %s1198
      // Predicated region
      $region73: #{mab_forward.3} parent=71 // pred_check
        %p1200 = pneg %p335
      $region74: #{mab_forward.3} parent=71 // pred_check_branch
        %1202 = sbr.rel (%p1200) target = $region76
      $region75: #{mab_forward.3} parent=71 // pred_region
        _
      $region76: #{mab_forward.3} parent=71 // pred_fallthru
        _
    $region72: #{mab_forward.3} parent=5 // pred_fallthru
      _
    %p1203 = scmp.le.s32.totalorder 2, %s19
    // Predicated region
    $region77: #{mab_forward.3} parent=5 // pred_check
      %p1204 = pneg %p1203
    $region78: #{mab_forward.3} parent=5 // pred_check_branch
      %1206 = sbr.rel (%p1204) target = $region80
    $region79: #{mab_forward.3} parent=5 // pred_region
      %s1207 = ssub.s32 %s19, 2
      // Predicated region
      $region81: #{mab_forward.3} parent=79 // pred_check
        %p1208 = pneg %p341
      $region82: #{mab_forward.3} parent=79 // pred_check_branch
        %1210 = sbr.rel (%p1208) target = $region84
      $region83: #{mab_forward.3} parent=79 // pred_region
        %p1211 = scmp.lt.s32.totalorder %s25, 1
        %s1212 = scalar_select %p1211, %s25, 1
        %s1213 = smul.addr %s1212, 4
        %s1214 = scalar_lea.vmem %s13, %s1213
      $region84: #{mab_forward.3} parent=79 // pred_fallthru
        _
    $region80: #{mab_forward.3} parent=5 // pred_fallthru
      _
  $region6: #{mab_forward.3} parent=0 // loop_footer
    %s23 = sadd.s32 1, %s19
  $region7: #{mab_forward.3} parent=0 // loop_footer_branch
    %18 = sbr.rel target = $region3
  $region8: #{mab_forward.3} parent=0 // loop_exit
    _

</llo_original>
